<compile_context>
chip_gen: v7x
topology: tpu7x:2x2x1
jax: 0.10.0
libtpu: 0.0.40
codegen_flags: <defaults>
</compile_context>

<pallas_src>
import jax
import jax.numpy as jnp
from jax.experimental import pallas as pl
from jax.experimental.pallas import tpu as pltpu

# ScaleLayer constants (ventilator-pressure style quantization grid)
PRESSURE_MIN = -1.895744294564641
PRESSURE_MAX = 64.8209917386395
PRESSURE_STEP = 0.07030214545121005


# ----------------------------------------------------------------------------
# Fused kernel: LSTM recurrence + head (Linear -> ReLU -> Linear -> ScaleLayer)
# ----------------------------------------------------------------------------
def fused_lstm_head_kernel(x_ref, wih_ref, whh_ref, b_ref,
                           w1_ref, b1_ref, w2_ref, b2_ref,
                           out_ref, h_all_scr):
    # x_ref:   (T, B, D_in)   time-major input (B already padded to sublane multiple)
    # wih_ref: (D_in, 4H)     = weight_ih_l0.T
    # whh_ref: (H, 4H)        = weight_hh_l0.T
    # b_ref:   (1, 4H)        = bias_ih_l0 + bias_hh_l0
    # w1_ref:  (H, L)         = logits[0].weight.T     b1_ref: (1, L)
    # w2_ref:  (1, L)         = logits[2].weight (row) b2_ref: (1, 1)
    # out_ref: (T, B)         scaled scalar output per (time, batch)
    # h_all_scr: (T, B, H)    VMEM scratch holding all hidden states
    T, B, D_in = x_ref.shape
    H = whh_ref.shape[0]

    # Hoist weight reads out of the (unrolled) loop.
    wih = wih_ref[...]
    whh = whh_ref[...]
    bias = b_ref[...]

    # ---- input projection for ALL timesteps at once (off the serial chain) ----
    x_all = x_ref[...].reshape(T * B, D_in)
    gates_in = jnp.dot(x_all, wih, preferred_element_type=jnp.float32) + bias  # (T*B, 4H)
    gates_in = gates_in.reshape(T, B, 4 * H)

    # ---- LSTM recurrence (statically unrolled; PyTorch gate order i,f,g,o) ----
    h = jnp.zeros((B, H), jnp.float32)
    c = jnp.zeros((B, H), jnp.float32)
    for t in range(T):
        gates = gates_in[t] + jnp.dot(h, whh, preferred_element_type=jnp.float32)  # (B, 4H)
        sig = jax.nn.sigmoid(gates)          # one full-width EUP sigmoid (covers i, f, o)
        i_g = sig[:, 0 * H:1 * H]
        f_g = sig[:, 1 * H:2 * H]
        o_g = sig[:, 3 * H:4 * H]
        g_g = jnp.tanh(gates[:, 2 * H:3 * H])  # only the g quadrant needs tanh
        c = f_g * c + i_g * g_g
        h = o_g * jnp.tanh(c)
        h_all_scr[t] = h

    # ---- head on the full hidden slab, still in VMEM ----
    L = w1_ref.shape[1]
    h_all = h_all_scr[...].reshape(T * B, H)
    z = jnp.dot(h_all, w1_ref[...], preferred_element_type=jnp.float32) + b1_ref[...]
    z = jnp.maximum(z, 0.0)                                   # ReLU, (T*B, L)
    # Linear(L -> 1) as broadcast-multiply + lane reduction (no 1-column MXU output).
    y = jnp.sum(z.reshape(T, B, L) * w2_ref[...], axis=-1) + b2_ref[...]   # (T, B)
    # ScaleLayer: quantize to the pressure grid, then clamp.
    steps = (y - PRESSURE_MIN) / PRESSURE_STEP
    y_q = jnp.round(steps) * PRESSURE_STEP + PRESSURE_MIN
    out_ref[...] = jnp.clip(y_q, PRESSURE_MIN, PRESSURE_MAX)


# ----------------------------------------------------------------------------
# One-time parameter preparation (transposes / bias fusion done once, not per call)
# ----------------------------------------------------------------------------
def prepare_params(params):
    return {
        "wih_t": jnp.asarray(params["w_ih"], jnp.float32).T,                   # (D_in, 4H)
        "whh_t": jnp.asarray(params["w_hh"], jnp.float32).T,                   # (H, 4H)
        "b": (jnp.asarray(params["b_ih"], jnp.float32)
              + jnp.asarray(params["b_hh"], jnp.float32)).reshape(1, -1),      # (1, 4H)
        "w1_t": jnp.asarray(params["w1"], jnp.float32).T,                      # (H, L)
        "b1": jnp.asarray(params["b1"], jnp.float32).reshape(1, -1),           # (1, L)
        "w2_row": jnp.asarray(params["w2"], jnp.float32).reshape(1, -1),       # (1, L)
        "b2": jnp.asarray(params["b2"], jnp.float32).reshape(1, 1),            # (1, 1)
    }


# ----------------------------------------------------------------------------
# Forward glue
# ----------------------------------------------------------------------------
def model_lstm_forward(x, prepared):
    # x: (B, T, D_in) batch_first, like the PyTorch module.  Returns (B, T) (x.squeeze()).
    B, T, D_in = x.shape
    H = prepared["whh_t"].shape[0]

    # Pad batch to a sublane multiple (8) for dense vreg / MXU-row utilization.
    B_pad = max(8, ((B + 7) // 8) * 8)
    x_tbd = jnp.transpose(x, (1, 0, 2)).astype(jnp.float32)    # (T, B, D_in) time-major
    if B_pad != B:
        x_tbd = jnp.pad(x_tbd, ((0, 0), (0, B_pad - B), (0, 0)))

    out_tb = pl.pallas_call(
        fused_lstm_head_kernel,
        out_shape=jax.ShapeDtypeStruct((T, B_pad), jnp.float32),
        in_specs=[pl.BlockSpec(memory_space=pltpu.MemorySpace.VMEM)] * 8,
        out_specs=pl.BlockSpec(memory_space=pltpu.MemorySpace.VMEM),
        scratch_shapes=[pltpu.VMEM((T, B_pad, H), jnp.float32)],
        # NOTE: at realistic B*T, tile over batch via BlockSpec + a "parallel" grid axis
        # (2 TCs on v7x) and set vmem_limit_bytes; full-array residency is fine at toy sizes.
    )(x_tbd, prepared["wih_t"], prepared["whh_t"], prepared["b"],
      prepared["w1_t"], prepared["b1"], prepared["w2_row"], prepared["b2"])

    # (T, B_pad) -> drop pad rows -> (B, T)   (matches x.squeeze() for B>1, T>1)
    return out_tb[:, :B].T


# ----------------------------------------------------------------------------
# Deterministic synthetic parameters (xavier-ish normal init)
# ----------------------------------------------------------------------------
def make_params(key, input_size, hidden_size, logit_dim):
    ks = jax.random.split(key, 8)
    H4 = 4 * hidden_size
    return {
        "w_ih": jax.random.normal(ks[0], (H4, input_size), jnp.float32) * 0.2,
        "w_hh": jax.random.normal(ks[1], (H4, hidden_size), jnp.float32) * 0.2,
        "b_ih": jax.random.normal(ks[2], (H4,), jnp.float32) * 0.1,
        "b_hh": jax.random.normal(ks[3], (H4,), jnp.float32) * 0.1,
        "w1": jax.random.normal(ks[4], (logit_dim, hidden_size), jnp.float32) * 0.2,
        "b1": jnp.zeros((logit_dim,), jnp.float32),
        "w2": jax.random.normal(ks[5], (1, logit_dim), jnp.float32) * 0.2,
        "b2": jnp.zeros((1,), jnp.float32),
    }


if __name__ == "__main__":
    B, T, D_IN, H, LOGIT = 2, 8, 8, 32, 32

    key = jax.random.PRNGKey(0)
    k_x, k_p = jax.random.split(key)
    x = jax.random.normal(k_x, (B, T, D_IN), jnp.float32)
    params = make_params(k_p, D_IN, H, LOGIT)
    prepared = prepare_params(params)

    out = model_lstm_forward(x, prepared)
    out = jax.block_until_ready(out)
    assert out.shape == (B, T), out.shape
    print("KERNEL_OK")
</pallas_src>

<mosaic_0001>
module attributes {stable_mosaic.version = 11 : i64} {
  func.func @fused_lstm_head_kernel(%arg0: memref<8x8x8xf32, #tpu.memory_space<vmem>>, %arg1: memref<8x128xf32, #tpu.memory_space<vmem>>, %arg2: memref<32x128xf32, #tpu.memory_space<vmem>>, %arg3: memref<1x128xf32, #tpu.memory_space<vmem>>, %arg4: memref<32x32xf32, #tpu.memory_space<vmem>>, %arg5: memref<1x32xf32, #tpu.memory_space<vmem>>, %arg6: memref<1x32xf32, #tpu.memory_space<vmem>>, %arg7: memref<1x1xf32, #tpu.memory_space<vmem>>, %arg8: memref<8x8xf32, #tpu.memory_space<vmem>>, %arg9: memref<8x8x32xf32, #tpu.memory_space<vmem>>) attributes {dimension_semantics = [], scalar_prefetch = 0 : i64, scratch_operands = 1 : i64, tpu.core_type = #tpu.core_type<tc>} {
    %c0 = arith.constant 0 : index
    %c0_0 = arith.constant 0 : index
    %0 = vector.load %arg1[%c0, %c0_0] : memref<8x128xf32, #tpu.memory_space<vmem>>, vector<8x128xf32>
    %c0_1 = arith.constant 0 : index
    %c0_2 = arith.constant 0 : index
    %1 = vector.load %arg2[%c0_1, %c0_2] : memref<32x128xf32, #tpu.memory_space<vmem>>, vector<32x128xf32>
    %c0_3 = arith.constant 0 : index
    %c0_4 = arith.constant 0 : index
    %2 = vector.load %arg3[%c0_3, %c0_4] : memref<1x128xf32, #tpu.memory_space<vmem>>, vector<1x128xf32>
    %c0_5 = arith.constant 0 : index
    %c0_6 = arith.constant 0 : index
    %c0_7 = arith.constant 0 : index
    %3 = vector.load %arg0[%c0_5, %c0_6, %c0_7] : memref<8x8x8xf32, #tpu.memory_space<vmem>>, vector<8x8x8xf32>
    %4 = vector.shape_cast %3 : vector<8x8x8xf32> to vector<64x8xf32>
    %cst = arith.constant dense<0.000000e+00> : vector<64x128xf32>
    %5 = tpu.matmul %4, %0, %cst {dimension_numbers = #tpu.dot_dimension_numbers<[1], [0], [0], [1], [0, 0, 1, 1], [], []>} : vector<64x8xf32>, vector<8x128xf32>, vector<64x128xf32> -> vector<64x128xf32>
    %6 = vector.broadcast %2 : vector<1x128xf32> to vector<64x128xf32>
    %7 = arith.addf %5, %6 : vector<64x128xf32>
    %8 = vector.shape_cast %7 : vector<64x128xf32> to vector<8x8x128xf32>
    %cst_8 = arith.constant 0.000000e+00 : f32
    %9 = vector.broadcast %cst_8 : f32 to vector<8x32xf32>
    %cst_9 = arith.constant 0.000000e+00 : f32
    %10 = vector.broadcast %cst_9 : f32 to vector<8x32xf32>
    %11 = vector.extract_strided_slice %8 {offsets = [0, 0, 0], sizes = [1, 8, 128], strides = [1, 1, 1]} : vector<8x8x128xf32> to vector<1x8x128xf32>
    %12 = vector.shape_cast %11 : vector<1x8x128xf32> to vector<8x128xf32>
    %cst_10 = arith.constant dense<0.000000e+00> : vector<8x128xf32>
    %13 = tpu.matmul %9, %1, %cst_10 {dimension_numbers = #tpu.dot_dimension_numbers<[1], [0], [0], [1], [0, 0, 1, 1], [], []>} : vector<8x32xf32>, vector<32x128xf32>, vector<8x128xf32> -> vector<8x128xf32>
    %14 = arith.addf %12, %13 : vector<8x128xf32>
    %15 = arith.negf %14 : vector<8x128xf32>
    %16 = math.exp %15 : vector<8x128xf32>
    %cst_11 = arith.constant 1.000000e+00 : f32
    %17 = vector.broadcast %cst_11 : f32 to vector<8x128xf32>
    %18 = arith.addf %17, %16 : vector<8x128xf32>
    %19 = arith.divf %17, %18 : vector<8x128xf32>
    %20 = vector.extract_strided_slice %19 {offsets = [0, 0], sizes = [8, 32], strides = [1, 1]} : vector<8x128xf32> to vector<8x32xf32>
    %21 = vector.extract_strided_slice %19 {offsets = [0, 32], sizes = [8, 32], strides = [1, 1]} : vector<8x128xf32> to vector<8x32xf32>
    %22 = vector.extract_strided_slice %19 {offsets = [0, 96], sizes = [8, 32], strides = [1, 1]} : vector<8x128xf32> to vector<8x32xf32>
    %23 = vector.extract_strided_slice %14 {offsets = [0, 64], sizes = [8, 32], strides = [1, 1]} : vector<8x128xf32> to vector<8x32xf32>
    %24 = math.tanh %23 : vector<8x32xf32>
    %25 = arith.mulf %21, %10 : vector<8x32xf32>
    %26 = arith.mulf %20, %24 : vector<8x32xf32>
    %27 = arith.addf %25, %26 : vector<8x32xf32>
    %28 = math.tanh %27 : vector<8x32xf32>
    %29 = arith.mulf %22, %28 : vector<8x32xf32>
    %c0_12 = arith.constant 0 : index
    %c0_13 = arith.constant 0 : index
    %c0_14 = arith.constant 0 : index
    %30 = vector.load %arg9[%c0_12, %c0_13, %c0_14] : memref<8x8x32xf32, #tpu.memory_space<vmem>>, vector<1x8x32xf32>
    %31 = vector.shape_cast %30 : vector<1x8x32xf32> to vector<8x32xf32>
    %32 = vector.shape_cast %29 : vector<8x32xf32> to vector<1x8x32xf32>
    tpu.vector_store %arg9[%c0_12, %c0_13, %c0_14], %32 {strides = array<i32>} : memref<8x8x32xf32, #tpu.memory_space<vmem>>, vector<1x8x32xf32>,
    %33 = vector.extract_strided_slice %8 {offsets = [1, 0, 0], sizes = [1, 8, 128], strides = [1, 1, 1]} : vector<8x8x128xf32> to vector<1x8x128xf32>
    %34 = vector.shape_cast %33 : vector<1x8x128xf32> to vector<8x128xf32>
    %cst_15 = arith.constant dense<0.000000e+00> : vector<8x128xf32>
    %35 = tpu.matmul %29, %1, %cst_15 {dimension_numbers = #tpu.dot_dimension_numbers<[1], [0], [0], [1], [0, 0, 1, 1], [], []>} : vector<8x32xf32>, vector<32x128xf32>, vector<8x128xf32> -> vector<8x128xf32>
    %36 = arith.addf %34, %35 : vector<8x128xf32>
    %37 = arith.negf %36 : vector<8x128xf32>
    %38 = math.exp %37 : vector<8x128xf32>
    %cst_16 = arith.constant 1.000000e+00 : f32
    %39 = vector.broadcast %cst_16 : f32 to vector<8x128xf32>
    %40 = arith.addf %39, %38 : vector<8x128xf32>
    %41 = arith.divf %39, %40 : vector<8x128xf32>
    %42 = vector.extract_strided_slice %41 {offsets = [0, 0], sizes = [8, 32], strides = [1, 1]} : vector<8x128xf32> to vector<8x32xf32>
    %43 = vector.extract_strided_slice %41 {offsets = [0, 32], sizes = [8, 32], strides = [1, 1]} : vector<8x128xf32> to vector<8x32xf32>
    %44 = vector.extract_strided_slice %41 {offsets = [0, 96], sizes = [8, 32], strides = [1, 1]} : vector<8x128xf32> to vector<8x32xf32>
    %45 = vector.extract_strided_slice %36 {offsets = [0, 64], sizes = [8, 32], strides = [1, 1]} : vector<8x128xf32> to vector<8x32xf32>
    %46 = math.tanh %45 : vector<8x32xf32>
    %47 = arith.mulf %43, %27 : vector<8x32xf32>
    %48 = arith.mulf %42, %46 : vector<8x32xf32>
    %49 = arith.addf %47, %48 : vector<8x32xf32>
    %50 = math.tanh %49 : vector<8x32xf32>
    %51 = arith.mulf %44, %50 : vector<8x32xf32>
    %c1 = arith.constant 1 : index
    %c0_17 = arith.constant 0 : index
    %c0_18 = arith.constant 0 : index
    %52 = vector.load %arg9[%c1, %c0_17, %c0_18] : memref<8x8x32xf32, #tpu.memory_space<vmem>>, vector<1x8x32xf32>
    %53 = vector.shape_cast %52 : vector<1x8x32xf32> to vector<8x32xf32>
    %54 = vector.shape_cast %51 : vector<8x32xf32> to vector<1x8x32xf32>
    tpu.vector_store %arg9[%c1, %c0_17, %c0_18], %54 {strides = array<i32>} : memref<8x8x32xf32, #tpu.memory_space<vmem>>, vector<1x8x32xf32>,
    %55 = vector.extract_strided_slice %8 {offsets = [2, 0, 0], sizes = [1, 8, 128], strides = [1, 1, 1]} : vector<8x8x128xf32> to vector<1x8x128xf32>
    %56 = vector.shape_cast %55 : vector<1x8x128xf32> to vector<8x128xf32>
    %cst_19 = arith.constant dense<0.000000e+00> : vector<8x128xf32>
    %57 = tpu.matmul %51, %1, %cst_19 {dimension_numbers = #tpu.dot_dimension_numbers<[1], [0], [0], [1], [0, 0, 1, 1], [], []>} : vector<8x32xf32>, vector<32x128xf32>, vector<8x128xf32> -> vector<8x128xf32>
    %58 = arith.addf %56, %57 : vector<8x128xf32>
    %59 = arith.negf %58 : vector<8x128xf32>
    %60 = math.exp %59 : vector<8x128xf32>
    %cst_20 = arith.constant 1.000000e+00 : f32
    %61 = vector.broadcast %cst_20 : f32 to vector<8x128xf32>
    %62 = arith.addf %61, %60 : vector<8x128xf32>
    %63 = arith.divf %61, %62 : vector<8x128xf32>
    %64 = vector.extract_strided_slice %63 {offsets = [0, 0], sizes = [8, 32], strides = [1, 1]} : vector<8x128xf32> to vector<8x32xf32>
    %65 = vector.extract_strided_slice %63 {offsets = [0, 32], sizes = [8, 32], strides = [1, 1]} : vector<8x128xf32> to vector<8x32xf32>
    %66 = vector.extract_strided_slice %63 {offsets = [0, 96], sizes = [8, 32], strides = [1, 1]} : vector<8x128xf32> to vector<8x32xf32>
    %67 = vector.extract_strided_slice %58 {offsets = [0, 64], sizes = [8, 32], strides = [1, 1]} : vector<8x128xf32> to vector<8x32xf32>
    %68 = math.tanh %67 : vector<8x32xf32>
    %69 = arith.mulf %65, %49 : vector<8x32xf32>
    %70 = arith.mulf %64, %68 : vector<8x32xf32>
    %71 = arith.addf %69, %70 : vector<8x32xf32>
    %72 = math.tanh %71 : vector<8x32xf32>
    %73 = arith.mulf %66, %72 : vector<8x32xf32>
    %c2 = arith.constant 2 : index
    %c0_21 = arith.constant 0 : index
    %c0_22 = arith.constant 0 : index
    %74 = vector.load %arg9[%c2, %c0_21, %c0_22] : memref<8x8x32xf32, #tpu.memory_space<vmem>>, vector<1x8x32xf32>
    %75 = vector.shape_cast %74 : vector<1x8x32xf32> to vector<8x32xf32>
    %76 = vector.shape_cast %73 : vector<8x32xf32> to vector<1x8x32xf32>
    tpu.vector_store %arg9[%c2, %c0_21, %c0_22], %76 {strides = array<i32>} : memref<8x8x32xf32, #tpu.memory_space<vmem>>, vector<1x8x32xf32>,
    %77 = vector.extract_strided_slice %8 {offsets = [3, 0, 0], sizes = [1, 8, 128], strides = [1, 1, 1]} : vector<8x8x128xf32> to vector<1x8x128xf32>
    %78 = vector.shape_cast %77 : vector<1x8x128xf32> to vector<8x128xf32>
    %cst_23 = arith.constant dense<0.000000e+00> : vector<8x128xf32>
    %79 = tpu.matmul %73, %1, %cst_23 {dimension_numbers = #tpu.dot_dimension_numbers<[1], [0], [0], [1], [0, 0, 1, 1], [], []>} : vector<8x32xf32>, vector<32x128xf32>, vector<8x128xf32> -> vector<8x128xf32>
    %80 = arith.addf %78, %79 : vector<8x128xf32>
    %81 = arith.negf %80 : vector<8x128xf32>
    %82 = math.exp %81 : vector<8x128xf32>
    %cst_24 = arith.constant 1.000000e+00 : f32
    %83 = vector.broadcast %cst_24 : f32 to vector<8x128xf32>
    %84 = arith.addf %83, %82 : vector<8x128xf32>
    %85 = arith.divf %83, %84 : vector<8x128xf32>
    %86 = vector.extract_strided_slice %85 {offsets = [0, 0], sizes = [8, 32], strides = [1, 1]} : vector<8x128xf32> to vector<8x32xf32>
    %87 = vector.extract_strided_slice %85 {offsets = [0, 32], sizes = [8, 32], strides = [1, 1]} : vector<8x128xf32> to vector<8x32xf32>
    %88 = vector.extract_strided_slice %85 {offsets = [0, 96], sizes = [8, 32], strides = [1, 1]} : vector<8x128xf32> to vector<8x32xf32>
    %89 = vector.extract_strided_slice %80 {offsets = [0, 64], sizes = [8, 32], strides = [1, 1]} : vector<8x128xf32> to vector<8x32xf32>
    %90 = math.tanh %89 : vector<8x32xf32>
    %91 = arith.mulf %87, %71 : vector<8x32xf32>
    %92 = arith.mulf %86, %90 : vector<8x32xf32>
    %93 = arith.addf %91, %92 : vector<8x32xf32>
    %94 = math.tanh %93 : vector<8x32xf32>
    %95 = arith.mulf %88, %94 : vector<8x32xf32>
    %c3 = arith.constant 3 : index
    %c0_25 = arith.constant 0 : index
    %c0_26 = arith.constant 0 : index
    %96 = vector.load %arg9[%c3, %c0_25, %c0_26] : memref<8x8x32xf32, #tpu.memory_space<vmem>>, vector<1x8x32xf32>
    %97 = vector.shape_cast %96 : vector<1x8x32xf32> to vector<8x32xf32>
    %98 = vector.shape_cast %95 : vector<8x32xf32> to vector<1x8x32xf32>
    tpu.vector_store %arg9[%c3, %c0_25, %c0_26], %98 {strides = array<i32>} : memref<8x8x32xf32, #tpu.memory_space<vmem>>, vector<1x8x32xf32>,
    %99 = vector.extract_strided_slice %8 {offsets = [4, 0, 0], sizes = [1, 8, 128], strides = [1, 1, 1]} : vector<8x8x128xf32> to vector<1x8x128xf32>
    %100 = vector.shape_cast %99 : vector<1x8x128xf32> to vector<8x128xf32>
    %cst_27 = arith.constant dense<0.000000e+00> : vector<8x128xf32>
    %101 = tpu.matmul %95, %1, %cst_27 {dimension_numbers = #tpu.dot_dimension_numbers<[1], [0], [0], [1], [0, 0, 1, 1], [], []>} : vector<8x32xf32>, vector<32x128xf32>, vector<8x128xf32> -> vector<8x128xf32>
    %102 = arith.addf %100, %101 : vector<8x128xf32>
    %103 = arith.negf %102 : vector<8x128xf32>
    %104 = math.exp %103 : vector<8x128xf32>
    %cst_28 = arith.constant 1.000000e+00 : f32
    %105 = vector.broadcast %cst_28 : f32 to vector<8x128xf32>
    %106 = arith.addf %105, %104 : vector<8x128xf32>
    %107 = arith.divf %105, %106 : vector<8x128xf32>
    %108 = vector.extract_strided_slice %107 {offsets = [0, 0], sizes = [8, 32], strides = [1, 1]} : vector<8x128xf32> to vector<8x32xf32>
    %109 = vector.extract_strided_slice %107 {offsets = [0, 32], sizes = [8, 32], strides = [1, 1]} : vector<8x128xf32> to vector<8x32xf32>
    %110 = vector.extract_strided_slice %107 {offsets = [0, 96], sizes = [8, 32], strides = [1, 1]} : vector<8x128xf32> to vector<8x32xf32>
    %111 = vector.extract_strided_slice %102 {offsets = [0, 64], sizes = [8, 32], strides = [1, 1]} : vector<8x128xf32> to vector<8x32xf32>
    %112 = math.tanh %111 : vector<8x32xf32>
    %113 = arith.mulf %109, %93 : vector<8x32xf32>
    %114 = arith.mulf %108, %112 : vector<8x32xf32>
    %115 = arith.addf %113, %114 : vector<8x32xf32>
    %116 = math.tanh %115 : vector<8x32xf32>
    %117 = arith.mulf %110, %116 : vector<8x32xf32>
    %c4 = arith.constant 4 : index
    %c0_29 = arith.constant 0 : index
    %c0_30 = arith.constant 0 : index
    %118 = vector.load %arg9[%c4, %c0_29, %c0_30] : memref<8x8x32xf32, #tpu.memory_space<vmem>>, vector<1x8x32xf32>
    %119 = vector.shape_cast %118 : vector<1x8x32xf32> to vector<8x32xf32>
    %120 = vector.shape_cast %117 : vector<8x32xf32> to vector<1x8x32xf32>
    tpu.vector_store %arg9[%c4, %c0_29, %c0_30], %120 {strides = array<i32>} : memref<8x8x32xf32, #tpu.memory_space<vmem>>, vector<1x8x32xf32>,
    %121 = vector.extract_strided_slice %8 {offsets = [5, 0, 0], sizes = [1, 8, 128], strides = [1, 1, 1]} : vector<8x8x128xf32> to vector<1x8x128xf32>
    %122 = vector.shape_cast %121 : vector<1x8x128xf32> to vector<8x128xf32>
    %cst_31 = arith.constant dense<0.000000e+00> : vector<8x128xf32>
    %123 = tpu.matmul %117, %1, %cst_31 {dimension_numbers = #tpu.dot_dimension_numbers<[1], [0], [0], [1], [0, 0, 1, 1], [], []>} : vector<8x32xf32>, vector<32x128xf32>, vector<8x128xf32> -> vector<8x128xf32>
    %124 = arith.addf %122, %123 : vector<8x128xf32>
    %125 = arith.negf %124 : vector<8x128xf32>
    %126 = math.exp %125 : vector<8x128xf32>
    %cst_32 = arith.constant 1.000000e+00 : f32
    %127 = vector.broadcast %cst_32 : f32 to vector<8x128xf32>
    %128 = arith.addf %127, %126 : vector<8x128xf32>
    %129 = arith.divf %127, %128 : vector<8x128xf32>
    %130 = vector.extract_strided_slice %129 {offsets = [0, 0], sizes = [8, 32], strides = [1, 1]} : vector<8x128xf32> to vector<8x32xf32>
    %131 = vector.extract_strided_slice %129 {offsets = [0, 32], sizes = [8, 32], strides = [1, 1]} : vector<8x128xf32> to vector<8x32xf32>
    %132 = vector.extract_strided_slice %129 {offsets = [0, 96], sizes = [8, 32], strides = [1, 1]} : vector<8x128xf32> to vector<8x32xf32>
    %133 = vector.extract_strided_slice %124 {offsets = [0, 64], sizes = [8, 32], strides = [1, 1]} : vector<8x128xf32> to vector<8x32xf32>
    %134 = math.tanh %133 : vector<8x32xf32>
    %135 = arith.mulf %131, %115 : vector<8x32xf32>
    %136 = arith.mulf %130, %134 : vector<8x32xf32>
    %137 = arith.addf %135, %136 : vector<8x32xf32>
    %138 = math.tanh %137 : vector<8x32xf32>
    %139 = arith.mulf %132, %138 : vector<8x32xf32>
    %c5 = arith.constant 5 : index
    %c0_33 = arith.constant 0 : index
    %c0_34 = arith.constant 0 : index
    %140 = vector.load %arg9[%c5, %c0_33, %c0_34] : memref<8x8x32xf32, #tpu.memory_space<vmem>>, vector<1x8x32xf32>
    %141 = vector.shape_cast %140 : vector<1x8x32xf32> to vector<8x32xf32>
    %142 = vector.shape_cast %139 : vector<8x32xf32> to vector<1x8x32xf32>
    tpu.vector_store %arg9[%c5, %c0_33, %c0_34], %142 {strides = array<i32>} : memref<8x8x32xf32, #tpu.memory_space<vmem>>, vector<1x8x32xf32>,
    %143 = vector.extract_strided_slice %8 {offsets = [6, 0, 0], sizes = [1, 8, 128], strides = [1, 1, 1]} : vector<8x8x128xf32> to vector<1x8x128xf32>
    %144 = vector.shape_cast %143 : vector<1x8x128xf32> to vector<8x128xf32>
    %cst_35 = arith.constant dense<0.000000e+00> : vector<8x128xf32>
    %145 = tpu.matmul %139, %1, %cst_35 {dimension_numbers = #tpu.dot_dimension_numbers<[1], [0], [0], [1], [0, 0, 1, 1], [], []>} : vector<8x32xf32>, vector<32x128xf32>, vector<8x128xf32> -> vector<8x128xf32>
    %146 = arith.addf %144, %145 : vector<8x128xf32>
    %147 = arith.negf %146 : vector<8x128xf32>
    %148 = math.exp %147 : vector<8x128xf32>
    %cst_36 = arith.constant 1.000000e+00 : f32
    %149 = vector.broadcast %cst_36 : f32 to vector<8x128xf32>
    %150 = arith.addf %149, %148 : vector<8x128xf32>
    %151 = arith.divf %149, %150 : vector<8x128xf32>
    %152 = vector.extract_strided_slice %151 {offsets = [0, 0], sizes = [8, 32], strides = [1, 1]} : vector<8x128xf32> to vector<8x32xf32>
    %153 = vector.extract_strided_slice %151 {offsets = [0, 32], sizes = [8, 32], strides = [1, 1]} : vector<8x128xf32> to vector<8x32xf32>
    %154 = vector.extract_strided_slice %151 {offsets = [0, 96], sizes = [8, 32], strides = [1, 1]} : vector<8x128xf32> to vector<8x32xf32>
    %155 = vector.extract_strided_slice %146 {offsets = [0, 64], sizes = [8, 32], strides = [1, 1]} : vector<8x128xf32> to vector<8x32xf32>
    %156 = math.tanh %155 : vector<8x32xf32>
    %157 = arith.mulf %153, %137 : vector<8x32xf32>
    %158 = arith.mulf %152, %156 : vector<8x32xf32>
    %159 = arith.addf %157, %158 : vector<8x32xf32>
    %160 = math.tanh %159 : vector<8x32xf32>
    %161 = arith.mulf %154, %160 : vector<8x32xf32>
    %c6 = arith.constant 6 : index
    %c0_37 = arith.constant 0 : index
    %c0_38 = arith.constant 0 : index
    %162 = vector.load %arg9[%c6, %c0_37, %c0_38] : memref<8x8x32xf32, #tpu.memory_space<vmem>>, vector<1x8x32xf32>
    %163 = vector.shape_cast %162 : vector<1x8x32xf32> to vector<8x32xf32>
    %164 = vector.shape_cast %161 : vector<8x32xf32> to vector<1x8x32xf32>
    tpu.vector_store %arg9[%c6, %c0_37, %c0_38], %164 {strides = array<i32>} : memref<8x8x32xf32, #tpu.memory_space<vmem>>, vector<1x8x32xf32>,
    %165 = vector.extract_strided_slice %8 {offsets = [7, 0, 0], sizes = [1, 8, 128], strides = [1, 1, 1]} : vector<8x8x128xf32> to vector<1x8x128xf32>
    %166 = vector.shape_cast %165 : vector<1x8x128xf32> to vector<8x128xf32>
    %cst_39 = arith.constant dense<0.000000e+00> : vector<8x128xf32>
    %167 = tpu.matmul %161, %1, %cst_39 {dimension_numbers = #tpu.dot_dimension_numbers<[1], [0], [0], [1], [0, 0, 1, 1], [], []>} : vector<8x32xf32>, vector<32x128xf32>, vector<8x128xf32> -> vector<8x128xf32>
    %168 = arith.addf %166, %167 : vector<8x128xf32>
    %169 = arith.negf %168 : vector<8x128xf32>
    %170 = math.exp %169 : vector<8x128xf32>
    %cst_40 = arith.constant 1.000000e+00 : f32
    %171 = vector.broadcast %cst_40 : f32 to vector<8x128xf32>
    %172 = arith.addf %171, %170 : vector<8x128xf32>
    %173 = arith.divf %171, %172 : vector<8x128xf32>
    %174 = vector.extract_strided_slice %173 {offsets = [0, 0], sizes = [8, 32], strides = [1, 1]} : vector<8x128xf32> to vector<8x32xf32>
    %175 = vector.extract_strided_slice %173 {offsets = [0, 32], sizes = [8, 32], strides = [1, 1]} : vector<8x128xf32> to vector<8x32xf32>
    %176 = vector.extract_strided_slice %173 {offsets = [0, 96], sizes = [8, 32], strides = [1, 1]} : vector<8x128xf32> to vector<8x32xf32>
    %177 = vector.extract_strided_slice %168 {offsets = [0, 64], sizes = [8, 32], strides = [1, 1]} : vector<8x128xf32> to vector<8x32xf32>
    %178 = math.tanh %177 : vector<8x32xf32>
    %179 = arith.mulf %175, %159 : vector<8x32xf32>
    %180 = arith.mulf %174, %178 : vector<8x32xf32>
    %181 = arith.addf %179, %180 : vector<8x32xf32>
    %182 = math.tanh %181 : vector<8x32xf32>
    %183 = arith.mulf %176, %182 : vector<8x32xf32>
    %c7 = arith.constant 7 : index
    %c0_41 = arith.constant 0 : index
    %c0_42 = arith.constant 0 : index
    %184 = vector.load %arg9[%c7, %c0_41, %c0_42] : memref<8x8x32xf32, #tpu.memory_space<vmem>>, vector<1x8x32xf32>
    %185 = vector.shape_cast %184 : vector<1x8x32xf32> to vector<8x32xf32>
    %186 = vector.shape_cast %183 : vector<8x32xf32> to vector<1x8x32xf32>
    tpu.vector_store %arg9[%c7, %c0_41, %c0_42], %186 {strides = array<i32>} : memref<8x8x32xf32, #tpu.memory_space<vmem>>, vector<1x8x32xf32>,
    %c0_43 = arith.constant 0 : index
    %c0_44 = arith.constant 0 : index
    %c0_45 = arith.constant 0 : index
    %187 = vector.load %arg9[%c0_43, %c0_44, %c0_45] : memref<8x8x32xf32, #tpu.memory_space<vmem>>, vector<8x8x32xf32>
    %188 = vector.shape_cast %187 : vector<8x8x32xf32> to vector<64x32xf32>
    %c0_46 = arith.constant 0 : index
    %c0_47 = arith.constant 0 : index
    %189 = vector.load %arg4[%c0_46, %c0_47] : memref<32x32xf32, #tpu.memory_space<vmem>>, vector<32x32xf32>
    %cst_48 = arith.constant dense<0.000000e+00> : vector<64x32xf32>
    %190 = tpu.matmul %188, %189, %cst_48 {dimension_numbers = #tpu.dot_dimension_numbers<[1], [0], [0], [1], [0, 0, 1, 1], [], []>} : vector<64x32xf32>, vector<32x32xf32>, vector<64x32xf32> -> vector<64x32xf32>
    %c0_49 = arith.constant 0 : index
    %c0_50 = arith.constant 0 : index
    %191 = vector.load %arg5[%c0_49, %c0_50] : memref<1x32xf32, #tpu.memory_space<vmem>>, vector<1x32xf32>
    %192 = vector.broadcast %191 : vector<1x32xf32> to vector<64x32xf32>
    %193 = arith.addf %190, %192 : vector<64x32xf32>
    %cst_51 = arith.constant 0.000000e+00 : f32
    %194 = vector.broadcast %cst_51 : f32 to vector<64x32xf32>
    %195 = arith.maximumf %193, %194 : vector<64x32xf32>
    %196 = vector.shape_cast %195 : vector<64x32xf32> to vector<8x8x32xf32>
    %c0_52 = arith.constant 0 : index
    %c0_53 = arith.constant 0 : index
    %197 = vector.load %arg6[%c0_52, %c0_53] : memref<1x32xf32, #tpu.memory_space<vmem>>, vector<1x32xf32>
    %198 = vector.shape_cast %197 : vector<1x32xf32> to vector<1x1x32xf32>
    %199 = vector.broadcast %198 : vector<1x1x32xf32> to vector<8x8x32xf32>
    %200 = arith.mulf %196, %199 : vector<8x8x32xf32>
    %cst_54 = arith.constant dense<0.000000e+00> : vector<8x8xf32>
    %201 = vector.multi_reduction <add>, %200, %cst_54 [2] : vector<8x8x32xf32> to vector<8x8xf32>
    %c0_55 = arith.constant 0 : index
    %c0_56 = arith.constant 0 : index
    %202 = vector.load %arg7[%c0_55, %c0_56] : memref<1x1xf32, #tpu.memory_space<vmem>>, vector<1x1xf32>
    %203 = vector.broadcast %202 : vector<1x1xf32> to vector<8x8xf32>
    %204 = arith.addf %201, %203 : vector<8x8xf32>
    %cst_57 = arith.constant -1.89574432 : f32
    %205 = vector.broadcast %cst_57 : f32 to vector<8x8xf32>
    %206 = arith.subf %204, %205 : vector<8x8xf32>
    %cst_58 = arith.constant 0.0703021437 : f32
    %207 = vector.broadcast %cst_58 : f32 to vector<8x8xf32>
    %208 = arith.divf %206, %207 : vector<8x8xf32>
    %209 = math.roundeven %208 : vector<8x8xf32>
    %cst_59 = arith.constant 0.0703021437 : f32
    %210 = vector.broadcast %cst_59 : f32 to vector<8x8xf32>
    %211 = arith.mulf %209, %210 : vector<8x8xf32>
    %cst_60 = arith.constant -1.89574432 : f32
    %212 = vector.broadcast %cst_60 : f32 to vector<8x8xf32>
    %213 = arith.addf %211, %212 : vector<8x8xf32>
    %cst_61 = arith.constant -1.89574432 : f32
    %cst_62 = arith.constant 64.8209915 : f32
    %214 = vector.broadcast %cst_61 : f32 to vector<8x8xf32>
    %215 = arith.maximumf %214, %213 : vector<8x8xf32>
    %216 = vector.broadcast %cst_62 : f32 to vector<8x8xf32>
    %217 = arith.minimumf %216, %215 : vector<8x8xf32>
    %c0_63 = arith.constant 0 : index
    %c0_64 = arith.constant 0 : index
    %218 = vector.load %arg8[%c0_63, %c0_64] : memref<8x8xf32, #tpu.memory_space<vmem>>, vector<8x8xf32>
    tpu.vector_store %arg8[%c0_63, %c0_64], %217 {strides = array<i32>} : memref<8x8xf32, #tpu.memory_space<vmem>>, vector<8x8xf32>,
    return
  }
}

</mosaic_0001>

<llo_original>
// kernel: tpu_custom_call.1
$region0: #{tpu_custom_call.1}
  #allocation0 [shape = 'u32[]', space=smem, size = 0x4, offset = 0x4, fixed_abs, tag = 'smem constant byte address 0x4 - core index']
  #allocation1 [shape = 'u32[144,128]{1,0:T(1,128)}', space=vmem, size = 0x12000, scoped, tag = 'internal scratch']
  #allocation2 [shape = 'f32[8,8,32]{2,1,0:T(8,128)}', space=vmem, size = 0x8000, scoped, tag = 'scratch operand']
  #allocation3 [shape = 'f32[1,1]{1,0:T(1,128)S(1)}', space=vmem, size = 0x200, scoped, tag = 'scoped memory for tpu_custom_call.1']
  %s0 = inlined_call_operand.hbm [shape: f32[8,8,8], index: 0, kind: input, shape index: {}]
  %s1 = inlined_call_operand.hbm [shape: f32[8,128], index: 1, kind: input, shape index: {}]
  %s2 = inlined_call_operand.hbm [shape: f32[32,128], index: 2, kind: input, shape index: {}]
  %s3 = inlined_call_operand.vmem [shape: f32[1,128], index: 3, kind: input, shape index: {}]
  %s4 = inlined_call_operand.hbm [shape: f32[32,32], index: 4, kind: input, shape index: {}]
  %s5 = inlined_call_operand.vmem [shape: f32[1,32], index: 5, kind: input, shape index: {}]
  %s6 = inlined_call_operand.vmem [shape: f32[1,32], index: 6, kind: input, shape index: {}]
  %s7 = inlined_call_operand.<no memory space> [shape: f32[1,1], index: 7, kind: input, shape index: {}]
  %s8 = inlined_call_operand.hbm [shape: f32[8,8], index: 8, kind: output, shape index: {}]
  %s9 = sld [smem:[#allocation0]]
  $region58: #{tpu_custom_call.1} parent=0
    _
  %s11 = ssub.s32 1, %s9
  %s12 = scalar_select 0, %s11, %s9
  %v13 = vstv %s7
  %14 = vst [vmem:[#allocation3] sm:$0x1] %v13
  $region1: #{tpu_custom_call.1} parent=0
    #allocation4 [shape = 'u8[32768]{0}', space=vmem, size = 0x8000, scoped, tag = 'input window, operand 0, single buffered']
    #allocation5 [shape = 's32[1]{0}', space=sflag, size = 0x4, scoped, tag = 'scoped memory for tpu_custom_call.1']
    #allocation6 [shape = 's32[1]{0}', space=sflag, size = 0x4, scoped, tag = 'scoped memory for tpu_custom_call.1']
    #allocation7 [shape = 'u8[4096]{0}', space=vmem, size = 0x1000, scoped, tag = 'input window, operand 1, single buffered']
    #allocation8 [shape = 's32[1]{0}', space=sflag, size = 0x4, scoped, tag = 'scoped memory for tpu_custom_call.1']
    #allocation9 [shape = 'u8[16384]{0}', space=vmem, size = 0x4000, scoped, tag = 'input window, operand 2, single buffered']
    #allocation10 [shape = 'u8[16384]{0}', space=vmem, size = 0x4000, scoped, tag = 'input window, operand 4, single buffered']
    #allocation11 [shape = 's32[1]{0}', space=sflag, size = 0x4, scoped, tag = 'scoped memory for tpu_custom_call.1']
    #allocation12 [shape = 'u8[4096]{0}', space=vmem, size = 0x1000, scoped, tag = 'output window, operand 0, single buffered']
    %15 = vsyncpa [#allocation5], 0
    %16 = vsyncpa [#allocation8], 0
    %17 = vsyncpa [#allocation11], 0
    %18 = vsyncpa [#allocation6], 0
    // Predicated region
    $region2: #{tpu_custom_call.1} parent=1 // pred_check
      _
    $region3: #{tpu_custom_call.1} parent=1 // pred_check_branch
      %20 = sbr.rel (0) target = $region5
    $region4: #{tpu_custom_call.1} parent=1 // pred_region
      %s22 = ssub.s32 1024, 1024
      %23 = vsyncadd [#allocation5], %s22
      %s24 = sshll.u32 [#allocation4], 4
      %s25 = int_to_ptr.vmem [resolvable:$true] %s24
      %30 = dma.hbm_to_vmem [thread:$0]  %s0, 1024, %s25, [#allocation5], 128, 128, 8
    $region5: #{tpu_custom_call.1} parent=1 // pred_fallthru
      _
    // Predicated region
    $region6: #{tpu_custom_call.1} parent=1 // pred_check
      _
    $region7: #{tpu_custom_call.1} parent=1 // pred_check_branch
      %32 = sbr.rel (0) target = $region9
    $region8: #{tpu_custom_call.1} parent=1 // pred_region
      %s34 = ssub.s32 128, 128
      %35 = vsyncadd [#allocation8], %s34
      %s37 = sshll.u32 [#allocation7], 4
      %s38 = int_to_ptr.vmem [resolvable:$true] %s37
      %40 = dma.hbm_to_vmem [thread:$0]  %s1, 128, %s38, [#allocation8]
    $region9: #{tpu_custom_call.1} parent=1 // pred_fallthru
      _
    // Predicated region
    $region10: #{tpu_custom_call.1} parent=1 // pred_check
      _
    $region11: #{tpu_custom_call.1} parent=1 // pred_check_branch
      %42 = sbr.rel (0) target = $region13
    $region12: #{tpu_custom_call.1} parent=1 // pred_region
      %s44 = ssub.s32 512, 512
      %45 = vsyncadd [#allocation8], %s44
      %s46 = sshll.u32 [#allocation9], 4
      %s47 = int_to_ptr.vmem [resolvable:$true] %s46
      %52 = dma.hbm_to_vmem [thread:$0]  %s2, 512, %s47, [#allocation8], 128, 128, 8
    $region13: #{tpu_custom_call.1} parent=1 // pred_fallthru
      _
    // Predicated region
    $region14: #{tpu_custom_call.1} parent=1 // pred_check
      _
    $region15: #{tpu_custom_call.1} parent=1 // pred_check_branch
      %54 = sbr.rel (0) target = $region17
    $region16: #{tpu_custom_call.1} parent=1 // pred_region
      _
    $region17: #{tpu_custom_call.1} parent=1 // pred_fallthru
      _
    // Predicated region
    $region18: #{tpu_custom_call.1} parent=1 // pred_check
      _
    $region19: #{tpu_custom_call.1} parent=1 // pred_check_branch
      %56 = sbr.rel (0) target = $region21
    $region20: #{tpu_custom_call.1} parent=1 // pred_region
      %s58 = ssub.s32 512, 512
      %59 = vsyncadd [#allocation11], %s58
      %s60 = sshll.u32 [#allocation10], 4
      %s61 = int_to_ptr.vmem [resolvable:$true] %s60
      %66 = dma.hbm_to_vmem [thread:$0]  %s4, 512, %s61, [#allocation11], 128, 128, 8
    $region21: #{tpu_custom_call.1} parent=1 // pred_fallthru
      _
    // Predicated region
    $region22: #{tpu_custom_call.1} parent=1 // pred_check
      _
    $region23: #{tpu_custom_call.1} parent=1 // pred_check_branch
      %68 = sbr.rel (0) target = $region25
    $region24: #{tpu_custom_call.1} parent=1 // pred_region
      _
    $region25: #{tpu_custom_call.1} parent=1 // pred_fallthru
      _
    // Predicated region
    $region26: #{tpu_custom_call.1} parent=1 // pred_check
      _
    $region27: #{tpu_custom_call.1} parent=1 // pred_check_branch
      %70 = sbr.rel (0) target = $region29
    $region28: #{tpu_custom_call.1} parent=1 // pred_region
      _
    $region29: #{tpu_custom_call.1} parent=1 // pred_fallthru
      _
    // Predicated region
    $region30: #{tpu_custom_call.1} parent=1 // pred_check
      _
    $region31: #{tpu_custom_call.1} parent=1 // pred_check_branch
      %72 = sbr.rel (0) target = $region33
    $region32: #{tpu_custom_call.1} parent=1 // pred_region
      _
    $region33: #{tpu_custom_call.1} parent=1 // pred_fallthru
      _
    // Predicated region
    $region34: #{tpu_custom_call.1} parent=1 // pred_check
      _
    $region35: #{tpu_custom_call.1} parent=1 // pred_check_branch
      %74 = sbr.rel (0) target = $region37
    $region36: #{tpu_custom_call.1} parent=1 // pred_region
      %75 = dma.done [#allocation5], 1024
    $region37: #{tpu_custom_call.1} parent=1 // pred_fallthru
      _
    // Predicated region
    $region38: #{tpu_custom_call.1} parent=1 // pred_check
      _
    $region39: #{tpu_custom_call.1} parent=1 // pred_check_branch
      %77 = sbr.rel (0) target = $region41
    $region40: #{tpu_custom_call.1} parent=1 // pred_region
      %78 = dma.done [#allocation8], 128
    $region41: #{tpu_custom_call.1} parent=1 // pred_fallthru
      _
    // Predicated region
    $region42: #{tpu_custom_call.1} parent=1 // pred_check
      _
    $region43: #{tpu_custom_call.1} parent=1 // pred_check_branch
      %80 = sbr.rel (0) target = $region45
    $region44: #{tpu_custom_call.1} parent=1 // pred_region
      %81 = dma.done [#allocation8], 512
    $region45: #{tpu_custom_call.1} parent=1 // pred_fallthru
      _
    // Predicated region
    $region46: #{tpu_custom_call.1} parent=1 // pred_check
      _
    $region47: #{tpu_custom_call.1} parent=1 // pred_check_branch
      %83 = sbr.rel (0) target = $region49
    $region48: #{tpu_custom_call.1} parent=1 // pred_region
      %84 = dma.done [#allocation11], 512
    $region49: #{tpu_custom_call.1} parent=1 // pred_fallthru
      _
    %v85 = vld [vmem:[#allocation7] sm:$0xff]
    %v86 = vld [vmem:[#allocation9] sm:$0xff]
    %v87 = vld [vmem:[#allocation9 + $0x8] sm:$0xff]
    %v88 = vld [vmem:[#allocation9 + $0x10] sm:$0xff]
    %v89 = vld [vmem:[#allocation9 + $0x18] sm:$0xff]
    %v90 = vld [vmem:[%s3] sm:$0x1]
    %v91 = vld [vmem:[#allocation4] sm:$0xff]
    %v92 = vld [vmem:[#allocation4 + $0x8] sm:$0xff]
    %v93 = vld [vmem:[#allocation4 + $0x10] sm:$0xff]
    %v94 = vld [vmem:[#allocation4 + $0x18] sm:$0xff]
    %v95 = vld [vmem:[#allocation4 + $0x20] sm:$0xff]
    %v96 = vld [vmem:[#allocation4 + $0x28] sm:$0xff]
    %v97 = vld [vmem:[#allocation4 + $0x30] sm:$0xff]
    %v98 = vld [vmem:[#allocation4 + $0x38] sm:$0xff]
    %v100 = vlaneseq
    %v101 = vshrl.u32 %v100, 7
    %v102 = vsub.s32 0, %v101
    %v103 = vrot.slane %v90, %v102
    %vm105 = vcmask 64512
    %v107 = vsel %vm105, %v91, 0
    %v110 = vsel %vm105, %v92, 0
    %v113 = vsel %vm105, %v93, 0
    %v116 = vsel %vm105, %v94, 0
    %v119 = vsel %vm105, %v95, 0
    %v122 = vsel %vm105, %v96, 0
    %v125 = vsel %vm105, %v97, 0
    %v128 = vsel %vm105, %v98, 0
    %130 = vmatprep.subr.mxu0 0.0
    %131 = vmatpush1.msra.mxu0 %v85
    %132 = vmatprep.subr.mxu0 0.0
    %133 = vmatpush1.msra.mxu0 0.0
    %134 = vmatprep.subr.mxu0 0.0
    %135 = vmatpush1.msra.mxu0 0.0
    %136 = vmatprep.subr.mxu0 0.0
    %137 = vmatpush1.msra.mxu0 0.0
    %138 = vmatprep.subr.mxu0 0.0
    %139 = vmatpush1.msra.mxu0 0.0
    %140 = vmatprep.subr.mxu0 0.0
    %141 = vmatpush1.msra.mxu0 0.0
    %142 = vmatprep.subr.mxu0 0.0
    %143 = vmatpush1.msra.mxu0 0.0
    %144 = vmatprep.subr.mxu0 0.0
    %145 = vmatpush1.msra.mxu0 0.0
    %146 = vmatprep.subr.mxu0 0.0
    %147 = vmatpush1.msra.mxu0 0.0
    %148 = vmatprep.subr.mxu0 0.0
    %149 = vmatpush1.msra.mxu0 0.0
    %150 = vmatprep.subr.mxu0 0.0
    %151 = vmatpush1.msra.mxu0 0.0
    %152 = vmatprep.subr.mxu0 0.0
    %153 = vmatpush1.msra.mxu0 0.0
    %154 = vmatprep.subr.mxu0 0.0
    %155 = vmatpush1.msra.mxu0 0.0
    %156 = vmatprep.subr.mxu0 0.0
    %157 = vmatpush1.msra.mxu0 0.0
    %158 = vmatprep.subr.mxu0 0.0
    %159 = vmatpush1.msra.mxu0 0.0
    %160 = vmatprep.subr.mxu0 0.0
    %161 = vmatpush1.msra.mxu0 0.0
    %162 = vmatprep.subr.mxu0 0.0
    %163 = vmatpush1.msra.mxu0 0.0
    %164 = vmatprep.subr.mxu0 0.0
    %165 = vmatpush1.msra.mxu0 0.0
    %166 = vmatprep.subr.mxu0 0.0
    %167 = vmatpush1.msra.mxu0 0.0
    %168 = vmatprep.subr.mxu0 0.0
    %169 = vmatpush1.msra.mxu0 0.0
    %170 = vmatprep.subr.mxu0 0.0
    %171 = vmatpush1.msra.mxu0 0.0
    %172 = vmatprep.subr.mxu0 0.0
    %173 = vmatpush1.msra.mxu0 0.0
    %174 = vmatprep.subr.mxu0 0.0
    %175 = vmatpush1.msra.mxu0 0.0
    %176 = vmatprep.subr.mxu0 0.0
    %177 = vmatpush1.msra.mxu0 0.0
    %178 = vmatprep.subr.mxu0 0.0
    %179 = vmatpush1.msra.mxu0 0.0
    %180 = vmatprep.subr.mxu0 0.0
    %181 = vmatpush1.msra.mxu0 0.0
    %182 = vmatprep.subr.mxu0 0.0
    %183 = vmatpush1.msra.mxu0 0.0
    %184 = vmatprep.subr.mxu0 0.0
    %185 = vmatpush1.msra.mxu0 0.0
    %186 = vmatprep.subr.mxu0 0.0
    %187 = vmatpush1.msra.mxu0 0.0
    %188 = vmatprep.subr.mxu0 0.0
    %189 = vmatpush1.msra.mxu0 0.0
    %190 = vmatprep.subr.mxu0 0.0
    %191 = vmatpush1.msra.mxu0 0.0
    %192 = vmatprep.subr.mxu0 0.0
    %193 = vmatpush1.msra.mxu0 0.0
    %194 = vmatprep.mubr.f32.mxu0 0.0
    %195 = vmatmul.mubr.f32.gmra.mrb[0].mxu0 %v107
    %v196 = vpop.f32.mrb[0].mxu0
    %v197 = vadd.f32 %v103, %v196
    %v198 = vpop.f32.mrb[0].mxu0
    %199 = vmatprep.mubr.f32.mxu0 0.0
    %200 = vmatmul.mubr.f32.gmra.mrb[0].mxu0 %v110
    %v201 = vpop.f32.mrb[0].mxu0
    %v202 = vadd.f32 %v103, %v201
    %v203 = vpop.f32.mrb[0].mxu0
    %204 = vmatprep.mubr.f32.mxu0 0.0
    %205 = vmatmul.mubr.f32.gmra.mrb[0].mxu0 %v113
    %v206 = vpop.f32.mrb[0].mxu0
    %v207 = vadd.f32 %v103, %v206
    %v208 = vpop.f32.mrb[0].mxu0
    %209 = vmatprep.mubr.f32.mxu0 0.0
    %210 = vmatmul.mubr.f32.gmra.mrb[0].mxu0 %v116
    %v211 = vpop.f32.mrb[0].mxu0
    %v212 = vadd.f32 %v103, %v211
    %v213 = vpop.f32.mrb[0].mxu0
    %214 = vmatprep.mubr.f32.mxu0 0.0
    %215 = vmatmul.mubr.f32.gmra.mrb[0].mxu0 %v119
    %v216 = vpop.f32.mrb[0].mxu0
    %v217 = vadd.f32 %v103, %v216
    %v218 = vpop.f32.mrb[0].mxu0
    %219 = vmatprep.mubr.f32.mxu0 0.0
    %220 = vmatmul.mubr.f32.gmra.mrb[0].mxu0 %v122
    %v221 = vpop.f32.mrb[0].mxu0
    %v222 = vadd.f32 %v103, %v221
    %v223 = vpop.f32.mrb[0].mxu0
    %224 = vmatprep.mubr.f32.mxu0 0.0
    %225 = vmatmul.mubr.f32.gmra.mrb[0].mxu0 %v125
    %v226 = vpop.f32.mrb[0].mxu0
    %v227 = vadd.f32 %v103, %v226
    %v228 = vpop.f32.mrb[0].mxu0
    %229 = vmatprep.mubr.f32.mxu0 0.0
    %230 = vmatmul.mubr.f32.gmra.mrb[0].mxu0 %v128
    %v231 = vpop.f32.mrb[0].mxu0
    %v232 = vadd.f32 %v103, %v231
    %v233 = vpop.f32.mrb[0].mxu0
    %234 = vdwg.mxu0
    %vm235 = vcmask 261120
    %v237 = vsel %vm235, 0.0, 0
    %239 = vmatprep.subr.mxu0 0.0
    %240 = vmatpush1.msra.mxu0 %v86
    %241 = vmatprep.subr.mxu0 0.0
    %242 = vmatpush1.msra.mxu0 %v87
    %243 = vmatprep.subr.mxu0 0.0
    %244 = vmatpush1.msra.mxu0 %v88
    %245 = vmatprep.subr.mxu0 0.0
    %246 = vmatpush1.msra.mxu0 %v89
    %247 = vmatprep.subr.mxu0 0.0
    %248 = vmatpush1.msra.mxu0 0.0
    %249 = vmatprep.subr.mxu0 0.0
    %250 = vmatpush1.msra.mxu0 0.0
    %251 = vmatprep.subr.mxu0 0.0
    %252 = vmatpush1.msra.mxu0 0.0
    %253 = vmatprep.subr.mxu0 0.0
    %254 = vmatpush1.msra.mxu0 0.0
    %255 = vmatprep.subr.mxu0 0.0
    %256 = vmatpush1.msra.mxu0 0.0
    %257 = vmatprep.subr.mxu0 0.0
    %258 = vmatpush1.msra.mxu0 0.0
    %259 = vmatprep.subr.mxu0 0.0
    %260 = vmatpush1.msra.mxu0 0.0
    %261 = vmatprep.subr.mxu0 0.0
    %262 = vmatpush1.msra.mxu0 0.0
    %263 = vmatprep.subr.mxu0 0.0
    %264 = vmatpush1.msra.mxu0 0.0
    %265 = vmatprep.subr.mxu0 0.0
    %266 = vmatpush1.msra.mxu0 0.0
    %267 = vmatprep.subr.mxu0 0.0
    %268 = vmatpush1.msra.mxu0 0.0
    %269 = vmatprep.subr.mxu0 0.0
    %270 = vmatpush1.msra.mxu0 0.0
    %271 = vmatprep.subr.mxu0 0.0
    %272 = vmatpush1.msra.mxu0 0.0
    %273 = vmatprep.subr.mxu0 0.0
    %274 = vmatpush1.msra.mxu0 0.0
    %275 = vmatprep.subr.mxu0 0.0
    %276 = vmatpush1.msra.mxu0 0.0
    %277 = vmatprep.subr.mxu0 0.0
    %278 = vmatpush1.msra.mxu0 0.0
    %279 = vmatprep.subr.mxu0 0.0
    %280 = vmatpush1.msra.mxu0 0.0
    %281 = vmatprep.subr.mxu0 0.0
    %282 = vmatpush1.msra.mxu0 0.0
    %283 = vmatprep.subr.mxu0 0.0
    %284 = vmatpush1.msra.mxu0 0.0
    %285 = vmatprep.subr.mxu0 0.0
    %286 = vmatpush1.msra.mxu0 0.0
    %287 = vmatprep.subr.mxu0 0.0
    %288 = vmatpush1.msra.mxu0 0.0
    %289 = vmatprep.subr.mxu0 0.0
    %290 = vmatpush1.msra.mxu0 0.0
    %291 = vmatprep.subr.mxu0 0.0
    %292 = vmatpush1.msra.mxu0 0.0
    %293 = vmatprep.subr.mxu0 0.0
    %294 = vmatpush1.msra.mxu0 0.0
    %295 = vmatprep.subr.mxu0 0.0
    %296 = vmatpush1.msra.mxu0 0.0
    %297 = vmatprep.subr.mxu0 0.0
    %298 = vmatpush1.msra.mxu0 0.0
    %299 = vmatprep.subr.mxu0 0.0
    %300 = vmatpush1.msra.mxu0 0.0
    %301 = vmatprep.subr.mxu0 0.0
    %302 = vmatpush1.msra.mxu0 0.0
    %303 = vmatprep.mubr.f32.mxu0 0.0
    %304 = vmatmul.mubr.f32.gmra.mrb[0].mxu0 %v237
    %v305 = vpop.f32.mrb[0].mxu0
    %v306 = vadd.f32 0.0, %v305
    %v307 = vpop.f32.mrb[0].mxu0
    %308 = vdwg.mxu0
    %v309 = vadd.f32 %v197, %v306
    %v310 = vxor.u32 %v309, 2147483648
    %v311 = vmul.f32 %v310, 1.442695
    %v312 = vpow.pop %v311
    %v313 = vadd.f32 %v312, 1.0
    %v314 = vrcp.pop %v313
    %v315 = vmul.f32 1.0, %v314
    %v316 = vtanh.pop %v309
    %v317 = vmul.f32 %v315, 0.0
    %319 = vrot.lane.b32.xlu0 %v316, 64
    %v320 = vpop.permute.xlu0 %319
    %v322 = vmul.f32 %v315, %v320
    %324 = vrot.lane.b32.xlu0 %v322, 32
    %v325 = vpop.permute.xlu0 %324
    %v327 = vadd.f32 %v317, %v325
    %v328 = vtanh.pop %v327
    %330 = vrot.lane.b32.xlu0 %v328, 64
    %v331 = vpop.permute.xlu0 %330
    %v333 = vmul.f32 %v315, %v331
    %335 = vrot.lane.b32.xlu0 %v333, 32
    %v336 = vpop.permute.xlu0 %335
    %338 = vst.msk [vmem:[#allocation2] sm:$0xff] %vm235, %v336
    %v339 = vsel %vm235, %v336, 0
    %341 = vmatprep.subr.mxu0 0.0
    %342 = vmatpush1.msra.mxu0 %v86
    %343 = vmatprep.subr.mxu0 0.0
    %344 = vmatpush1.msra.mxu0 %v87
    %345 = vmatprep.subr.mxu0 0.0
    %346 = vmatpush1.msra.mxu0 %v88
    %347 = vmatprep.subr.mxu0 0.0
    %348 = vmatpush1.msra.mxu0 %v89
    %349 = vmatprep.subr.mxu0 0.0
    %350 = vmatpush1.msra.mxu0 0.0
    %351 = vmatprep.subr.mxu0 0.0
    %352 = vmatpush1.msra.mxu0 0.0
    %353 = vmatprep.subr.mxu0 0.0
    %354 = vmatpush1.msra.mxu0 0.0
    %355 = vmatprep.subr.mxu0 0.0
    %356 = vmatpush1.msra.mxu0 0.0
    %357 = vmatprep.subr.mxu0 0.0
    %358 = vmatpush1.msra.mxu0 0.0
    %359 = vmatprep.subr.mxu0 0.0
    %360 = vmatpush1.msra.mxu0 0.0
    %361 = vmatprep.subr.mxu0 0.0
    %362 = vmatpush1.msra.mxu0 0.0
    %363 = vmatprep.subr.mxu0 0.0
    %364 = vmatpush1.msra.mxu0 0.0
    %365 = vmatprep.subr.mxu0 0.0
    %366 = vmatpush1.msra.mxu0 0.0
    %367 = vmatprep.subr.mxu0 0.0
    %368 = vmatpush1.msra.mxu0 0.0
    %369 = vmatprep.subr.mxu0 0.0
    %370 = vmatpush1.msra.mxu0 0.0
    %371 = vmatprep.subr.mxu0 0.0
    %372 = vmatpush1.msra.mxu0 0.0
    %373 = vmatprep.subr.mxu0 0.0
    %374 = vmatpush1.msra.mxu0 0.0
    %375 = vmatprep.subr.mxu0 0.0
    %376 = vmatpush1.msra.mxu0 0.0
    %377 = vmatprep.subr.mxu0 0.0
    %378 = vmatpush1.msra.mxu0 0.0
    %379 = vmatprep.subr.mxu0 0.0
    %380 = vmatpush1.msra.mxu0 0.0
    %381 = vmatprep.subr.mxu0 0.0
    %382 = vmatpush1.msra.mxu0 0.0
    %383 = vmatprep.subr.mxu0 0.0
    %384 = vmatpush1.msra.mxu0 0.0
    %385 = vmatprep.subr.mxu0 0.0
    %386 = vmatpush1.msra.mxu0 0.0
    %387 = vmatprep.subr.mxu0 0.0
    %388 = vmatpush1.msra.mxu0 0.0
    %389 = vmatprep.subr.mxu0 0.0
    %390 = vmatpush1.msra.mxu0 0.0
    %391 = vmatprep.subr.mxu0 0.0
    %392 = vmatpush1.msra.mxu0 0.0
    %393 = vmatprep.subr.mxu0 0.0
    %394 = vmatpush1.msra.mxu0 0.0
    %395 = vmatprep.subr.mxu0 0.0
    %396 = vmatpush1.msra.mxu0 0.0
    %397 = vmatprep.subr.mxu0 0.0
    %398 = vmatpush1.msra.mxu0 0.0
    %399 = vmatprep.subr.mxu0 0.0
    %400 = vmatpush1.msra.mxu0 0.0
    %401 = vmatprep.subr.mxu0 0.0
    %402 = vmatpush1.msra.mxu0 0.0
    %403 = vmatprep.subr.mxu0 0.0
    %404 = vmatpush1.msra.mxu0 0.0
    %405 = vmatprep.mubr.f32.mxu0 0.0
    %406 = vmatmul.mubr.f32.gmra.mrb[0].mxu0 %v339
    %v407 = vpop.f32.mrb[0].mxu0
    %v408 = vadd.f32 0.0, %v407
    %v409 = vpop.f32.mrb[0].mxu0
    %410 = vdwg.mxu0
    %v411 = vadd.f32 %v202, %v408
    %v412 = vxor.u32 %v411, 2147483648
    %v413 = vmul.f32 %v412, 1.442695
    %v414 = vpow.pop %v413
    %v415 = vadd.f32 %v414, 1.0
    %v416 = vrcp.pop %v415
    %v417 = vmul.f32 1.0, %v416
    %v418 = vtanh.pop %v411
    %v419 = vmul.f32 %v417, %v327
    %421 = vrot.lane.b32.xlu0 %v418, 64
    %v422 = vpop.permute.xlu0 %421
    %v424 = vmul.f32 %v417, %v422
    %426 = vrot.lane.b32.xlu0 %v424, 32
    %v427 = vpop.permute.xlu0 %426
    %v429 = vadd.f32 %v419, %v427
    %v430 = vtanh.pop %v429
    %432 = vrot.lane.b32.xlu0 %v430, 64
    %v433 = vpop.permute.xlu0 %432
    %v435 = vmul.f32 %v417, %v433
    %437 = vrot.lane.b32.xlu0 %v435, 32
    %v438 = vpop.permute.xlu0 %437
    %s440 = scalar_lea.vmem [#allocation2], 8
    %441 = vst.msk [vmem:[%s440] sm:$0xff] %vm235, %v438
    %v442 = vsel %vm235, %v438, 0
    %444 = vmatprep.subr.mxu0 0.0
    %445 = vmatpush1.msra.mxu0 %v86
    %446 = vmatprep.subr.mxu0 0.0
    %447 = vmatpush1.msra.mxu0 %v87
    %448 = vmatprep.subr.mxu0 0.0
    %449 = vmatpush1.msra.mxu0 %v88
    %450 = vmatprep.subr.mxu0 0.0
    %451 = vmatpush1.msra.mxu0 %v89
    %452 = vmatprep.subr.mxu0 0.0
    %453 = vmatpush1.msra.mxu0 0.0
    %454 = vmatprep.subr.mxu0 0.0
    %455 = vmatpush1.msra.mxu0 0.0
    %456 = vmatprep.subr.mxu0 0.0
    %457 = vmatpush1.msra.mxu0 0.0
    %458 = vmatprep.subr.mxu0 0.0
    %459 = vmatpush1.msra.mxu0 0.0
    %460 = vmatprep.subr.mxu0 0.0
    %461 = vmatpush1.msra.mxu0 0.0
    %462 = vmatprep.subr.mxu0 0.0
    %463 = vmatpush1.msra.mxu0 0.0
    %464 = vmatprep.subr.mxu0 0.0
    %465 = vmatpush1.msra.mxu0 0.0
    %466 = vmatprep.subr.mxu0 0.0
    %467 = vmatpush1.msra.mxu0 0.0
    %468 = vmatprep.subr.mxu0 0.0
    %469 = vmatpush1.msra.mxu0 0.0
    %470 = vmatprep.subr.mxu0 0.0
    %471 = vmatpush1.msra.mxu0 0.0
    %472 = vmatprep.subr.mxu0 0.0
    %473 = vmatpush1.msra.mxu0 0.0
    %474 = vmatprep.subr.mxu0 0.0
    %475 = vmatpush1.msra.mxu0 0.0
    %476 = vmatprep.subr.mxu0 0.0
    %477 = vmatpush1.msra.mxu0 0.0
    %478 = vmatprep.subr.mxu0 0.0
    %479 = vmatpush1.msra.mxu0 0.0
    %480 = vmatprep.subr.mxu0 0.0
    %481 = vmatpush1.msra.mxu0 0.0
    %482 = vmatprep.subr.mxu0 0.0
    %483 = vmatpush1.msra.mxu0 0.0
    %484 = vmatprep.subr.mxu0 0.0
    %485 = vmatpush1.msra.mxu0 0.0
    %486 = vmatprep.subr.mxu0 0.0
    %487 = vmatpush1.msra.mxu0 0.0
    %488 = vmatprep.subr.mxu0 0.0
    %489 = vmatpush1.msra.mxu0 0.0
    %490 = vmatprep.subr.mxu0 0.0
    %491 = vmatpush1.msra.mxu0 0.0
    %492 = vmatprep.subr.mxu0 0.0
    %493 = vmatpush1.msra.mxu0 0.0
    %494 = vmatprep.subr.mxu0 0.0
    %495 = vmatpush1.msra.mxu0 0.0
    %496 = vmatprep.subr.mxu0 0.0
    %497 = vmatpush1.msra.mxu0 0.0
    %498 = vmatprep.subr.mxu0 0.0
    %499 = vmatpush1.msra.mxu0 0.0
    %500 = vmatprep.subr.mxu0 0.0
    %501 = vmatpush1.msra.mxu0 0.0
    %502 = vmatprep.subr.mxu0 0.0
    %503 = vmatpush1.msra.mxu0 0.0
    %504 = vmatprep.subr.mxu0 0.0
    %505 = vmatpush1.msra.mxu0 0.0
    %506 = vmatprep.subr.mxu0 0.0
    %507 = vmatpush1.msra.mxu0 0.0
    %508 = vmatprep.mubr.f32.mxu0 0.0
    %509 = vmatmul.mubr.f32.gmra.mrb[0].mxu0 %v442
    %v510 = vpop.f32.mrb[0].mxu0
    %v511 = vadd.f32 0.0, %v510
    %v512 = vpop.f32.mrb[0].mxu0
    %513 = vdwg.mxu0
    %v514 = vadd.f32 %v207, %v511
    %v515 = vxor.u32 %v514, 2147483648
    %v516 = vmul.f32 %v515, 1.442695
    %v517 = vpow.pop %v516
    %v518 = vadd.f32 %v517, 1.0
    %v519 = vrcp.pop %v518
    %v520 = vmul.f32 1.0, %v519
    %v521 = vtanh.pop %v514
    %v522 = vmul.f32 %v520, %v429
    %524 = vrot.lane.b32.xlu0 %v521, 64
    %v525 = vpop.permute.xlu0 %524
    %v527 = vmul.f32 %v520, %v525
    %529 = vrot.lane.b32.xlu0 %v527, 32
    %v530 = vpop.permute.xlu0 %529
    %v532 = vadd.f32 %v522, %v530
    %v533 = vtanh.pop %v532
    %535 = vrot.lane.b32.xlu0 %v533, 64
    %v536 = vpop.permute.xlu0 %535
    %v538 = vmul.f32 %v520, %v536
    %540 = vrot.lane.b32.xlu0 %v538, 32
    %v541 = vpop.permute.xlu0 %540
    %s543 = scalar_lea.vmem [#allocation2], 16
    %544 = vst.msk [vmem:[%s543] sm:$0xff] %vm235, %v541
    %v545 = vsel %vm235, %v541, 0
    %547 = vmatprep.subr.mxu0 0.0
    %548 = vmatpush1.msra.mxu0 %v86
    %549 = vmatprep.subr.mxu0 0.0
    %550 = vmatpush1.msra.mxu0 %v87
    %551 = vmatprep.subr.mxu0 0.0
    %552 = vmatpush1.msra.mxu0 %v88
    %553 = vmatprep.subr.mxu0 0.0
    %554 = vmatpush1.msra.mxu0 %v89
    %555 = vmatprep.subr.mxu0 0.0
    %556 = vmatpush1.msra.mxu0 0.0
    %557 = vmatprep.subr.mxu0 0.0
    %558 = vmatpush1.msra.mxu0 0.0
    %559 = vmatprep.subr.mxu0 0.0
    %560 = vmatpush1.msra.mxu0 0.0
    %561 = vmatprep.subr.mxu0 0.0
    %562 = vmatpush1.msra.mxu0 0.0
    %563 = vmatprep.subr.mxu0 0.0
    %564 = vmatpush1.msra.mxu0 0.0
    %565 = vmatprep.subr.mxu0 0.0
    %566 = vmatpush1.msra.mxu0 0.0
    %567 = vmatprep.subr.mxu0 0.0
    %568 = vmatpush1.msra.mxu0 0.0
    %569 = vmatprep.subr.mxu0 0.0
    %570 = vmatpush1.msra.mxu0 0.0
    %571 = vmatprep.subr.mxu0 0.0
    %572 = vmatpush1.msra.mxu0 0.0
    %573 = vmatprep.subr.mxu0 0.0
    %574 = vmatpush1.msra.mxu0 0.0
    %575 = vmatprep.subr.mxu0 0.0
    %576 = vmatpush1.msra.mxu0 0.0
    %577 = vmatprep.subr.mxu0 0.0
    %578 = vmatpush1.msra.mxu0 0.0
    %579 = vmatprep.subr.mxu0 0.0
    %580 = vmatpush1.msra.mxu0 0.0
    %581 = vmatprep.subr.mxu0 0.0
    %582 = vmatpush1.msra.mxu0 0.0
    %583 = vmatprep.subr.mxu0 0.0
    %584 = vmatpush1.msra.mxu0 0.0
    %585 = vmatprep.subr.mxu0 0.0
    %586 = vmatpush1.msra.mxu0 0.0
    %587 = vmatprep.subr.mxu0 0.0
    %588 = vmatpush1.msra.mxu0 0.0
    %589 = vmatprep.subr.mxu0 0.0
    %590 = vmatpush1.msra.mxu0 0.0
    %591 = vmatprep.subr.mxu0 0.0
    %592 = vmatpush1.msra.mxu0 0.0
    %593 = vmatprep.subr.mxu0 0.0
    %594 = vmatpush1.msra.mxu0 0.0
    %595 = vmatprep.subr.mxu0 0.0
    %596 = vmatpush1.msra.mxu0 0.0
    %597 = vmatprep.subr.mxu0 0.0
    %598 = vmatpush1.msra.mxu0 0.0
    %599 = vmatprep.subr.mxu0 0.0
    %600 = vmatpush1.msra.mxu0 0.0
    %601 = vmatprep.subr.mxu0 0.0
    %602 = vmatpush1.msra.mxu0 0.0
    %603 = vmatprep.subr.mxu0 0.0
    %604 = vmatpush1.msra.mxu0 0.0
    %605 = vmatprep.subr.mxu0 0.0
    %606 = vmatpush1.msra.mxu0 0.0
    %607 = vmatprep.subr.mxu0 0.0
    %608 = vmatpush1.msra.mxu0 0.0
    %609 = vmatprep.subr.mxu0 0.0
    %610 = vmatpush1.msra.mxu0 0.0
    %611 = vmatprep.mubr.f32.mxu0 0.0
    %612 = vmatmul.mubr.f32.gmra.mrb[0].mxu0 %v545
    %v613 = vpop.f32.mrb[0].mxu0
    %v614 = vadd.f32 0.0, %v613
    %v615 = vpop.f32.mrb[0].mxu0
    %616 = vdwg.mxu0
    %v617 = vadd.f32 %v212, %v614
    %v618 = vxor.u32 %v617, 2147483648
    %v619 = vmul.f32 %v618, 1.442695
    %v620 = vpow.pop %v619
    %v621 = vadd.f32 %v620, 1.0
    %v622 = vrcp.pop %v621
    %v623 = vmul.f32 1.0, %v622
    %v624 = vtanh.pop %v617
    %v625 = vmul.f32 %v623, %v532
    %627 = vrot.lane.b32.xlu0 %v624, 64
    %v628 = vpop.permute.xlu0 %627
    %v630 = vmul.f32 %v623, %v628
    %632 = vrot.lane.b32.xlu0 %v630, 32
    %v633 = vpop.permute.xlu0 %632
    %v635 = vadd.f32 %v625, %v633
    %v636 = vtanh.pop %v635
    %638 = vrot.lane.b32.xlu0 %v636, 64
    %v639 = vpop.permute.xlu0 %638
    %v641 = vmul.f32 %v623, %v639
    %643 = vrot.lane.b32.xlu0 %v641, 32
    %v644 = vpop.permute.xlu0 %643
    %s646 = scalar_lea.vmem [#allocation2], 24
    %647 = vst.msk [vmem:[%s646] sm:$0xff] %vm235, %v644
    %v648 = vsel %vm235, %v644, 0
    %650 = vmatprep.subr.mxu0 0.0
    %651 = vmatpush1.msra.mxu0 %v86
    %652 = vmatprep.subr.mxu0 0.0
    %653 = vmatpush1.msra.mxu0 %v87
    %654 = vmatprep.subr.mxu0 0.0
    %655 = vmatpush1.msra.mxu0 %v88
    %656 = vmatprep.subr.mxu0 0.0
    %657 = vmatpush1.msra.mxu0 %v89
    %658 = vmatprep.subr.mxu0 0.0
    %659 = vmatpush1.msra.mxu0 0.0
    %660 = vmatprep.subr.mxu0 0.0
    %661 = vmatpush1.msra.mxu0 0.0
    %662 = vmatprep.subr.mxu0 0.0
    %663 = vmatpush1.msra.mxu0 0.0
    %664 = vmatprep.subr.mxu0 0.0
    %665 = vmatpush1.msra.mxu0 0.0
    %666 = vmatprep.subr.mxu0 0.0
    %667 = vmatpush1.msra.mxu0 0.0
    %668 = vmatprep.subr.mxu0 0.0
    %669 = vmatpush1.msra.mxu0 0.0
    %670 = vmatprep.subr.mxu0 0.0
    %671 = vmatpush1.msra.mxu0 0.0
    %672 = vmatprep.subr.mxu0 0.0
    %673 = vmatpush1.msra.mxu0 0.0
    %674 = vmatprep.subr.mxu0 0.0
    %675 = vmatpush1.msra.mxu0 0.0
    %676 = vmatprep.subr.mxu0 0.0
    %677 = vmatpush1.msra.mxu0 0.0
    %678 = vmatprep.subr.mxu0 0.0
    %679 = vmatpush1.msra.mxu0 0.0
    %680 = vmatprep.subr.mxu0 0.0
    %681 = vmatpush1.msra.mxu0 0.0
    %682 = vmatprep.subr.mxu0 0.0
    %683 = vmatpush1.msra.mxu0 0.0
    %684 = vmatprep.subr.mxu0 0.0
    %685 = vmatpush1.msra.mxu0 0.0
    %686 = vmatprep.subr.mxu0 0.0
    %687 = vmatpush1.msra.mxu0 0.0
    %688 = vmatprep.subr.mxu0 0.0
    %689 = vmatpush1.msra.mxu0 0.0
    %690 = vmatprep.subr.mxu0 0.0
    %691 = vmatpush1.msra.mxu0 0.0
    %692 = vmatprep.subr.mxu0 0.0
    %693 = vmatpush1.msra.mxu0 0.0
    %694 = vmatprep.subr.mxu0 0.0
    %695 = vmatpush1.msra.mxu0 0.0
    %696 = vmatprep.subr.mxu0 0.0
    %697 = vmatpush1.msra.mxu0 0.0
    %698 = vmatprep.subr.mxu0 0.0
    %699 = vmatpush1.msra.mxu0 0.0
    %700 = vmatprep.subr.mxu0 0.0
    %701 = vmatpush1.msra.mxu0 0.0
    %702 = vmatprep.subr.mxu0 0.0
    %703 = vmatpush1.msra.mxu0 0.0
    %704 = vmatprep.subr.mxu0 0.0
    %705 = vmatpush1.msra.mxu0 0.0
    %706 = vmatprep.subr.mxu0 0.0
    %707 = vmatpush1.msra.mxu0 0.0
    %708 = vmatprep.subr.mxu0 0.0
    %709 = vmatpush1.msra.mxu0 0.0
    %710 = vmatprep.subr.mxu0 0.0
    %711 = vmatpush1.msra.mxu0 0.0
    %712 = vmatprep.subr.mxu0 0.0
    %713 = vmatpush1.msra.mxu0 0.0
    %714 = vmatprep.mubr.f32.mxu0 0.0
    %715 = vmatmul.mubr.f32.gmra.mrb[0].mxu0 %v648
    %v716 = vpop.f32.mrb[0].mxu0
    %v717 = vadd.f32 0.0, %v716
    %v718 = vpop.f32.mrb[0].mxu0
    %719 = vdwg.mxu0
    %v720 = vadd.f32 %v217, %v717
    %v721 = vxor.u32 %v720, 2147483648
    %v722 = vmul.f32 %v721, 1.442695
    %v723 = vpow.pop %v722
    %v724 = vadd.f32 %v723, 1.0
    %v725 = vrcp.pop %v724
    %v726 = vmul.f32 1.0, %v725
    %v727 = vtanh.pop %v720
    %v728 = vmul.f32 %v726, %v635
    %730 = vrot.lane.b32.xlu0 %v727, 64
    %v731 = vpop.permute.xlu0 %730
    %v733 = vmul.f32 %v726, %v731
    %735 = vrot.lane.b32.xlu0 %v733, 32
    %v736 = vpop.permute.xlu0 %735
    %v738 = vadd.f32 %v728, %v736
    %v739 = vtanh.pop %v738
    %741 = vrot.lane.b32.xlu0 %v739, 64
    %v742 = vpop.permute.xlu0 %741
    %v744 = vmul.f32 %v726, %v742
    %746 = vrot.lane.b32.xlu0 %v744, 32
    %v747 = vpop.permute.xlu0 %746
    %s749 = scalar_lea.vmem [#allocation2], 32
    %750 = vst.msk [vmem:[%s749] sm:$0xff] %vm235, %v747
    %v751 = vsel %vm235, %v747, 0
    %753 = vmatprep.subr.mxu0 0.0
    %754 = vmatpush1.msra.mxu0 %v86
    %755 = vmatprep.subr.mxu0 0.0
    %756 = vmatpush1.msra.mxu0 %v87
    %757 = vmatprep.subr.mxu0 0.0
    %758 = vmatpush1.msra.mxu0 %v88
    %759 = vmatprep.subr.mxu0 0.0
    %760 = vmatpush1.msra.mxu0 %v89
    %761 = vmatprep.subr.mxu0 0.0
    %762 = vmatpush1.msra.mxu0 0.0
    %763 = vmatprep.subr.mxu0 0.0
    %764 = vmatpush1.msra.mxu0 0.0
    %765 = vmatprep.subr.mxu0 0.0
    %766 = vmatpush1.msra.mxu0 0.0
    %767 = vmatprep.subr.mxu0 0.0
    %768 = vmatpush1.msra.mxu0 0.0
    %769 = vmatprep.subr.mxu0 0.0
    %770 = vmatpush1.msra.mxu0 0.0
    %771 = vmatprep.subr.mxu0 0.0
    %772 = vmatpush1.msra.mxu0 0.0
    %773 = vmatprep.subr.mxu0 0.0
    %774 = vmatpush1.msra.mxu0 0.0
    %775 = vmatprep.subr.mxu0 0.0
    %776 = vmatpush1.msra.mxu0 0.0
    %777 = vmatprep.subr.mxu0 0.0
    %778 = vmatpush1.msra.mxu0 0.0
    %779 = vmatprep.subr.mxu0 0.0
    %780 = vmatpush1.msra.mxu0 0.0
    %781 = vmatprep.subr.mxu0 0.0
    %782 = vmatpush1.msra.mxu0 0.0
    %783 = vmatprep.subr.mxu0 0.0
    %784 = vmatpush1.msra.mxu0 0.0
    %785 = vmatprep.subr.mxu0 0.0
    %786 = vmatpush1.msra.mxu0 0.0
    %787 = vmatprep.subr.mxu0 0.0
    %788 = vmatpush1.msra.mxu0 0.0
    %789 = vmatprep.subr.mxu0 0.0
    %790 = vmatpush1.msra.mxu0 0.0
    %791 = vmatprep.subr.mxu0 0.0
    %792 = vmatpush1.msra.mxu0 0.0
    %793 = vmatprep.subr.mxu0 0.0
    %794 = vmatpush1.msra.mxu0 0.0
    %795 = vmatprep.subr.mxu0 0.0
    %796 = vmatpush1.msra.mxu0 0.0
    %797 = vmatprep.subr.mxu0 0.0
    %798 = vmatpush1.msra.mxu0 0.0
    %799 = vmatprep.subr.mxu0 0.0
    %800 = vmatpush1.msra.mxu0 0.0
    %801 = vmatprep.subr.mxu0 0.0
    %802 = vmatpush1.msra.mxu0 0.0
    %803 = vmatprep.subr.mxu0 0.0
    %804 = vmatpush1.msra.mxu0 0.0
    %805 = vmatprep.subr.mxu0 0.0
    %806 = vmatpush1.msra.mxu0 0.0
    %807 = vmatprep.subr.mxu0 0.0
    %808 = vmatpush1.msra.mxu0 0.0
    %809 = vmatprep.subr.mxu0 0.0
    %810 = vmatpush1.msra.mxu0 0.0
    %811 = vmatprep.subr.mxu0 0.0
    %812 = vmatpush1.msra.mxu0 0.0
    %813 = vmatprep.subr.mxu0 0.0
    %814 = vmatpush1.msra.mxu0 0.0
    %815 = vmatprep.subr.mxu0 0.0
    %816 = vmatpush1.msra.mxu0 0.0
    %817 = vmatprep.mubr.f32.mxu0 0.0
    %818 = vmatmul.mubr.f32.gmra.mrb[0].mxu0 %v751
    %v819 = vpop.f32.mrb[0].mxu0
    %v820 = vadd.f32 0.0, %v819
    %v821 = vpop.f32.mrb[0].mxu0
    %822 = vdwg.mxu0
    %v823 = vadd.f32 %v222, %v820
    %v824 = vxor.u32 %v823, 2147483648
    %v825 = vmul.f32 %v824, 1.442695
    %v826 = vpow.pop %v825
    %v827 = vadd.f32 %v826, 1.0
    %v828 = vrcp.pop %v827
    %v829 = vmul.f32 1.0, %v828
    %v830 = vtanh.pop %v823
    %v831 = vmul.f32 %v829, %v738
    %833 = vrot.lane.b32.xlu0 %v830, 64
    %v834 = vpop.permute.xlu0 %833
    %v836 = vmul.f32 %v829, %v834
    %838 = vrot.lane.b32.xlu0 %v836, 32
    %v839 = vpop.permute.xlu0 %838
    %v841 = vadd.f32 %v831, %v839
    %v842 = vtanh.pop %v841
    %844 = vrot.lane.b32.xlu0 %v842, 64
    %v845 = vpop.permute.xlu0 %844
    %v847 = vmul.f32 %v829, %v845
    %849 = vrot.lane.b32.xlu0 %v847, 32
    %v850 = vpop.permute.xlu0 %849
    %s852 = scalar_lea.vmem [#allocation2], 40
    %853 = vst.msk [vmem:[%s852] sm:$0xff] %vm235, %v850
    %v854 = vsel %vm235, %v850, 0
    %856 = vmatprep.subr.mxu0 0.0
    %857 = vmatpush1.msra.mxu0 %v86
    %858 = vmatprep.subr.mxu0 0.0
    %859 = vmatpush1.msra.mxu0 %v87
    %860 = vmatprep.subr.mxu0 0.0
    %861 = vmatpush1.msra.mxu0 %v88
    %862 = vmatprep.subr.mxu0 0.0
    %863 = vmatpush1.msra.mxu0 %v89
    %864 = vmatprep.subr.mxu0 0.0
    %865 = vmatpush1.msra.mxu0 0.0
    %866 = vmatprep.subr.mxu0 0.0
    %867 = vmatpush1.msra.mxu0 0.0
    %868 = vmatprep.subr.mxu0 0.0
    %869 = vmatpush1.msra.mxu0 0.0
    %870 = vmatprep.subr.mxu0 0.0
    %871 = vmatpush1.msra.mxu0 0.0
    %872 = vmatprep.subr.mxu0 0.0
    %873 = vmatpush1.msra.mxu0 0.0
    %874 = vmatprep.subr.mxu0 0.0
    %875 = vmatpush1.msra.mxu0 0.0
    %876 = vmatprep.subr.mxu0 0.0
    %877 = vmatpush1.msra.mxu0 0.0
    %878 = vmatprep.subr.mxu0 0.0
    %879 = vmatpush1.msra.mxu0 0.0
    %880 = vmatprep.subr.mxu0 0.0
    %881 = vmatpush1.msra.mxu0 0.0
    %882 = vmatprep.subr.mxu0 0.0
    %883 = vmatpush1.msra.mxu0 0.0
    %884 = vmatprep.subr.mxu0 0.0
    %885 = vmatpush1.msra.mxu0 0.0
    %886 = vmatprep.subr.mxu0 0.0
    %887 = vmatpush1.msra.mxu0 0.0
    %888 = vmatprep.subr.mxu0 0.0
    %889 = vmatpush1.msra.mxu0 0.0
    %890 = vmatprep.subr.mxu0 0.0
    %891 = vmatpush1.msra.mxu0 0.0
    %892 = vmatprep.subr.mxu0 0.0
    %893 = vmatpush1.msra.mxu0 0.0
    %894 = vmatprep.subr.mxu0 0.0
    %895 = vmatpush1.msra.mxu0 0.0
    %896 = vmatprep.subr.mxu0 0.0
    %897 = vmatpush1.msra.mxu0 0.0
    %898 = vmatprep.subr.mxu0 0.0
    %899 = vmatpush1.msra.mxu0 0.0
    %900 = vmatprep.subr.mxu0 0.0
    %901 = vmatpush1.msra.mxu0 0.0
    %902 = vmatprep.subr.mxu0 0.0
    %903 = vmatpush1.msra.mxu0 0.0
    %904 = vmatprep.subr.mxu0 0.0
    %905 = vmatpush1.msra.mxu0 0.0
    %906 = vmatprep.subr.mxu0 0.0
    %907 = vmatpush1.msra.mxu0 0.0
    %908 = vmatprep.subr.mxu0 0.0
    %909 = vmatpush1.msra.mxu0 0.0
    %910 = vmatprep.subr.mxu0 0.0
    %911 = vmatpush1.msra.mxu0 0.0
    %912 = vmatprep.subr.mxu0 0.0
    %913 = vmatpush1.msra.mxu0 0.0
    %914 = vmatprep.subr.mxu0 0.0
    %915 = vmatpush1.msra.mxu0 0.0
    %916 = vmatprep.subr.mxu0 0.0
    %917 = vmatpush1.msra.mxu0 0.0
    %918 = vmatprep.subr.mxu0 0.0
    %919 = vmatpush1.msra.mxu0 0.0
    %920 = vmatprep.mubr.f32.mxu0 0.0
    %921 = vmatmul.mubr.f32.gmra.mrb[0].mxu0 %v854
    %v922 = vpop.f32.mrb[0].mxu0
    %v923 = vadd.f32 0.0, %v922
    %v924 = vpop.f32.mrb[0].mxu0
    %925 = vdwg.mxu0
    %v926 = vadd.f32 %v227, %v923
    %v927 = vxor.u32 %v926, 2147483648
    %v928 = vmul.f32 %v927, 1.442695
    %v929 = vpow.pop %v928
    %v930 = vadd.f32 %v929, 1.0
    %v931 = vrcp.pop %v930
    %v932 = vmul.f32 1.0, %v931
    %v933 = vtanh.pop %v926
    %v934 = vmul.f32 %v932, %v841
    %936 = vrot.lane.b32.xlu0 %v933, 64
    %v937 = vpop.permute.xlu0 %936
    %v939 = vmul.f32 %v932, %v937
    %941 = vrot.lane.b32.xlu0 %v939, 32
    %v942 = vpop.permute.xlu0 %941
    %v944 = vadd.f32 %v934, %v942
    %v945 = vtanh.pop %v944
    %947 = vrot.lane.b32.xlu0 %v945, 64
    %v948 = vpop.permute.xlu0 %947
    %v950 = vmul.f32 %v932, %v948
    %952 = vrot.lane.b32.xlu0 %v950, 32
    %v953 = vpop.permute.xlu0 %952
    %s955 = scalar_lea.vmem [#allocation2], 48
    %956 = vst.msk [vmem:[%s955] sm:$0xff] %vm235, %v953
    %v957 = vsel %vm235, %v953, 0
    %959 = vmatprep.subr.mxu0 0.0
    %960 = vmatpush1.msra.mxu0 %v86
    %961 = vmatprep.subr.mxu0 0.0
    %962 = vmatpush1.msra.mxu0 %v87
    %963 = vmatprep.subr.mxu0 0.0
    %964 = vmatpush1.msra.mxu0 %v88
    %965 = vmatprep.subr.mxu0 0.0
    %966 = vmatpush1.msra.mxu0 %v89
    %967 = vmatprep.subr.mxu0 0.0
    %968 = vmatpush1.msra.mxu0 0.0
    %969 = vmatprep.subr.mxu0 0.0
    %970 = vmatpush1.msra.mxu0 0.0
    %971 = vmatprep.subr.mxu0 0.0
    %972 = vmatpush1.msra.mxu0 0.0
    %973 = vmatprep.subr.mxu0 0.0
    %974 = vmatpush1.msra.mxu0 0.0
    %975 = vmatprep.subr.mxu0 0.0
    %976 = vmatpush1.msra.mxu0 0.0
    %977 = vmatprep.subr.mxu0 0.0
    %978 = vmatpush1.msra.mxu0 0.0
    %979 = vmatprep.subr.mxu0 0.0
    %980 = vmatpush1.msra.mxu0 0.0
    %981 = vmatprep.subr.mxu0 0.0
    %982 = vmatpush1.msra.mxu0 0.0
    %983 = vmatprep.subr.mxu0 0.0
    %984 = vmatpush1.msra.mxu0 0.0
    %985 = vmatprep.subr.mxu0 0.0
    %986 = vmatpush1.msra.mxu0 0.0
    %987 = vmatprep.subr.mxu0 0.0
    %988 = vmatpush1.msra.mxu0 0.0
    %989 = vmatprep.subr.mxu0 0.0
    %990 = vmatpush1.msra.mxu0 0.0
    %991 = vmatprep.subr.mxu0 0.0
    %992 = vmatpush1.msra.mxu0 0.0
    %993 = vmatprep.subr.mxu0 0.0
    %994 = vmatpush1.msra.mxu0 0.0
    %995 = vmatprep.subr.mxu0 0.0
    %996 = vmatpush1.msra.mxu0 0.0
    %997 = vmatprep.subr.mxu0 0.0
    %998 = vmatpush1.msra.mxu0 0.0
    %999 = vmatprep.subr.mxu0 0.0
    %1000 = vmatpush1.msra.mxu0 0.0
    %1001 = vmatprep.subr.mxu0 0.0
    %1002 = vmatpush1.msra.mxu0 0.0
    %1003 = vmatprep.subr.mxu0 0.0
    %1004 = vmatpush1.msra.mxu0 0.0
    %1005 = vmatprep.subr.mxu0 0.0
    %1006 = vmatpush1.msra.mxu0 0.0
    %1007 = vmatprep.subr.mxu0 0.0
    %1008 = vmatpush1.msra.mxu0 0.0
    %1009 = vmatprep.subr.mxu0 0.0
    %1010 = vmatpush1.msra.mxu0 0.0
    %1011 = vmatprep.subr.mxu0 0.0
    %1012 = vmatpush1.msra.mxu0 0.0
    %1013 = vmatprep.subr.mxu0 0.0
    %1014 = vmatpush1.msra.mxu0 0.0
    %1015 = vmatprep.subr.mxu0 0.0
    %1016 = vmatpush1.msra.mxu0 0.0
    %1017 = vmatprep.subr.mxu0 0.0
    %1018 = vmatpush1.msra.mxu0 0.0
    %1019 = vmatprep.subr.mxu0 0.0
    %1020 = vmatpush1.msra.mxu0 0.0
    %1021 = vmatprep.subr.mxu0 0.0
    %1022 = vmatpush1.msra.mxu0 0.0
    %1023 = vmatprep.mubr.f32.mxu0 0.0
    %1024 = vmatmul.mubr.f32.gmra.mrb[0].mxu0 %v957
    %v1025 = vpop.f32.mrb[0].mxu0
    %v1026 = vadd.f32 0.0, %v1025
    %v1027 = vpop.f32.mrb[0].mxu0
    %1028 = vdwg.mxu0
    %v1029 = vadd.f32 %v232, %v1026
    %v1030 = vxor.u32 %v1029, 2147483648
    %v1031 = vmul.f32 %v1030, 1.442695
    %v1032 = vpow.pop %v1031
    %v1033 = vadd.f32 %v1032, 1.0
    %v1034 = vrcp.pop %v1033
    %v1035 = vmul.f32 1.0, %v1034
    %v1036 = vtanh.pop %v1029
    %v1037 = vmul.f32 %v1035, %v944
    %1039 = vrot.lane.b32.xlu0 %v1036, 64
    %v1040 = vpop.permute.xlu0 %1039
    %v1042 = vmul.f32 %v1035, %v1040
    %1044 = vrot.lane.b32.xlu0 %v1042, 32
    %v1045 = vpop.permute.xlu0 %1044
    %v1047 = vadd.f32 %v1037, %v1045
    %v1048 = vtanh.pop %v1047
    %1050 = vrot.lane.b32.xlu0 %v1048, 64
    %v1051 = vpop.permute.xlu0 %1050
    %v1053 = vmul.f32 %v1035, %v1051
    %1055 = vrot.lane.b32.xlu0 %v1053, 32
    %v1056 = vpop.permute.xlu0 %1055
    %s1058 = scalar_lea.vmem [#allocation2], 56
    %1059 = vst.msk [vmem:[%s1058] sm:$0xff] %vm235, %v1056
    %v1060 = vld [vmem:[#allocation2] sm:$0xff]
    %v1061 = vld [vmem:[#allocation2 + $0x8] sm:$0xff]
    %v1062 = vld [vmem:[#allocation2 + $0x10] sm:$0xff]
    %v1063 = vld [vmem:[#allocation2 + $0x18] sm:$0xff]
    %v1064 = vld [vmem:[#allocation2 + $0x20] sm:$0xff]
    %v1065 = vld [vmem:[#allocation2 + $0x28] sm:$0xff]
    %v1066 = vld [vmem:[#allocation2 + $0x30] sm:$0xff]
    %v1067 = vld [vmem:[#allocation2 + $0x38] sm:$0xff]
    %v1068 = vld [vmem:[#allocation10] sm:$0xff]
    %v1069 = vld [vmem:[#allocation10 + $0x8] sm:$0xff]
    %v1070 = vld [vmem:[#allocation10 + $0x10] sm:$0xff]
    %v1071 = vld [vmem:[#allocation10 + $0x18] sm:$0xff]
    %v1072 = vld [vmem:[%s5] sm:$0x1]
    %v1074 = vlaneseq
    %v1075 = vshrl.u32 %v1074, 7
    %v1076 = vsub.s32 0, %v1075
    %v1077 = vrot.slane %v1072, %v1076
    %v1080 = vsel %vm235, %v1060, 0
    %v1083 = vsel %vm235, %v1061, 0
    %v1086 = vsel %vm235, %v1062, 0
    %v1089 = vsel %vm235, %v1063, 0
    %v1092 = vsel %vm235, %v1064, 0
    %v1095 = vsel %vm235, %v1065, 0
    %v1098 = vsel %vm235, %v1066, 0
    %v1101 = vsel %vm235, %v1067, 0
    %1103 = vmatprep.subr.mxu0 0.0
    %1104 = vmatpush1.msra.mxu0 %v1068
    %1105 = vmatprep.subr.mxu0 0.0
    %1106 = vmatpush1.msra.mxu0 %v1069
    %1107 = vmatprep.subr.mxu0 0.0
    %1108 = vmatpush1.msra.mxu0 %v1070
    %1109 = vmatprep.subr.mxu0 0.0
    %1110 = vmatpush1.msra.mxu0 %v1071
    %1111 = vmatprep.subr.mxu0 0.0
    %1112 = vmatpush1.msra.mxu0 0.0
    %1113 = vmatprep.subr.mxu0 0.0
    %1114 = vmatpush1.msra.mxu0 0.0
    %1115 = vmatprep.subr.mxu0 0.0
    %1116 = vmatpush1.msra.mxu0 0.0
    %1117 = vmatprep.subr.mxu0 0.0
    %1118 = vmatpush1.msra.mxu0 0.0
    %1119 = vmatprep.subr.mxu0 0.0
    %1120 = vmatpush1.msra.mxu0 0.0
    %1121 = vmatprep.subr.mxu0 0.0
    %1122 = vmatpush1.msra.mxu0 0.0
    %1123 = vmatprep.subr.mxu0 0.0
    %1124 = vmatpush1.msra.mxu0 0.0
    %1125 = vmatprep.subr.mxu0 0.0
    %1126 = vmatpush1.msra.mxu0 0.0
    %1127 = vmatprep.subr.mxu0 0.0
    %1128 = vmatpush1.msra.mxu0 0.0
    %1129 = vmatprep.subr.mxu0 0.0
    %1130 = vmatpush1.msra.mxu0 0.0
    %1131 = vmatprep.subr.mxu0 0.0
    %1132 = vmatpush1.msra.mxu0 0.0
    %1133 = vmatprep.subr.mxu0 0.0
    %1134 = vmatpush1.msra.mxu0 0.0
    %1135 = vmatprep.subr.mxu0 0.0
    %1136 = vmatpush1.msra.mxu0 0.0
    %1137 = vmatprep.subr.mxu0 0.0
    %1138 = vmatpush1.msra.mxu0 0.0
    %1139 = vmatprep.subr.mxu0 0.0
    %1140 = vmatpush1.msra.mxu0 0.0
    %1141 = vmatprep.subr.mxu0 0.0
    %1142 = vmatpush1.msra.mxu0 0.0
    %1143 = vmatprep.subr.mxu0 0.0
    %1144 = vmatpush1.msra.mxu0 0.0
    %1145 = vmatprep.subr.mxu0 0.0
    %1146 = vmatpush1.msra.mxu0 0.0
    %1147 = vmatprep.subr.mxu0 0.0
    %1148 = vmatpush1.msra.mxu0 0.0
    %1149 = vmatprep.subr.mxu0 0.0
    %1150 = vmatpush1.msra.mxu0 0.0
    %1151 = vmatprep.subr.mxu0 0.0
    %1152 = vmatpush1.msra.mxu0 0.0
    %1153 = vmatprep.subr.mxu0 0.0
    %1154 = vmatpush1.msra.mxu0 0.0
    %1155 = vmatprep.subr.mxu0 0.0
    %1156 = vmatpush1.msra.mxu0 0.0
    %1157 = vmatprep.subr.mxu0 0.0
    %1158 = vmatpush1.msra.mxu0 0.0
    %1159 = vmatprep.subr.mxu0 0.0
    %1160 = vmatpush1.msra.mxu0 0.0
    %1161 = vmatprep.subr.mxu0 0.0
    %1162 = vmatpush1.msra.mxu0 0.0
    %1163 = vmatprep.subr.mxu0 0.0
    %1164 = vmatpush1.msra.mxu0 0.0
    %1165 = vmatprep.subr.mxu0 0.0
    %1166 = vmatpush1.msra.mxu0 0.0
    %1167 = vmatprep.mubr.f32.mxu0 0.0
    %1168 = vmatmul.mubr.f32.gmra.mrb[0].mxu0 %v1080
    %v1169 = vpop.f32.mrb[0].mxu0
    %v1170 = vadd.f32 %v1077, %v1169
    %v1171 = vpop.f32.mrb[0].mxu0
    %1172 = vmatprep.mubr.f32.mxu0 0.0
    %1173 = vmatmul.mubr.f32.gmra.mrb[0].mxu0 %v1083
    %v1174 = vpop.f32.mrb[0].mxu0
    %v1175 = vadd.f32 %v1077, %v1174
    %v1176 = vpop.f32.mrb[0].mxu0
    %1177 = vmatprep.mubr.f32.mxu0 0.0
    %1178 = vmatmul.mubr.f32.gmra.mrb[0].mxu0 %v1086
    %v1179 = vpop.f32.mrb[0].mxu0
    %v1180 = vadd.f32 %v1077, %v1179
    %v1181 = vpop.f32.mrb[0].mxu0
    %1182 = vmatprep.mubr.f32.mxu0 0.0
    %1183 = vmatmul.mubr.f32.gmra.mrb[0].mxu0 %v1089
    %v1184 = vpop.f32.mrb[0].mxu0
    %v1185 = vadd.f32 %v1077, %v1184
    %v1186 = vpop.f32.mrb[0].mxu0
    %1187 = vmatprep.mubr.f32.mxu0 0.0
    %1188 = vmatmul.mubr.f32.gmra.mrb[0].mxu0 %v1092
    %v1189 = vpop.f32.mrb[0].mxu0
    %v1190 = vadd.f32 %v1077, %v1189
    %v1191 = vpop.f32.mrb[0].mxu0
    %1192 = vmatprep.mubr.f32.mxu0 0.0
    %1193 = vmatmul.mubr.f32.gmra.mrb[0].mxu0 %v1095
    %v1194 = vpop.f32.mrb[0].mxu0
    %v1195 = vadd.f32 %v1077, %v1194
    %v1196 = vpop.f32.mrb[0].mxu0
    %1197 = vmatprep.mubr.f32.mxu0 0.0
    %1198 = vmatmul.mubr.f32.gmra.mrb[0].mxu0 %v1098
    %v1199 = vpop.f32.mrb[0].mxu0
    %v1200 = vadd.f32 %v1077, %v1199
    %v1201 = vpop.f32.mrb[0].mxu0
    %1202 = vmatprep.mubr.f32.mxu0 0.0
    %1203 = vmatmul.mubr.f32.gmra.mrb[0].mxu0 %v1101
    %v1204 = vpop.f32.mrb[0].mxu0
    %v1205 = vadd.f32 %v1077, %v1204
    %v1206 = vpop.f32.mrb[0].mxu0
    %1207 = vdwg.mxu0
    %v1208 = vmax.f32 %v1170, 0.0
    %v1209 = vmax.f32 %v1175, 0.0
    %v1210 = vmax.f32 %v1180, 0.0
    %v1211 = vmax.f32 %v1185, 0.0
    %v1212 = vmax.f32 %v1190, 0.0
    %v1213 = vmax.f32 %v1195, 0.0
    %v1214 = vmax.f32 %v1200, 0.0
    %v1215 = vmax.f32 %v1205, 0.0
    %v1216 = vld [vmem:[%s6] sm:$0x1]
    %v1218 = vlaneseq
    %v1219 = vshrl.u32 %v1218, 7
    %v1220 = vsub.s32 0, %v1219
    %v1221 = vrot.slane %v1216, %v1220
    %v1223 = vmul.f32 %v1208, %v1221
    %v1224 = vmul.f32 %v1209, %v1221
    %v1225 = vmul.f32 %v1210, %v1221
    %v1226 = vmul.f32 %v1211, %v1221
    %v1227 = vmul.f32 %v1212, %v1221
    %v1228 = vmul.f32 %v1213, %v1221
    %v1229 = vmul.f32 %v1214, %v1221
    %v1230 = vmul.f32 %v1215, %v1221
    %v1231 = vsel %vm235, %v1223, 0.0
    %1232 = vadd.xlane.f32.xlu0 %v1231
    %v1233 = vpop.xlane.xlu0 %1232
    %v1234 = vsel %vm235, %v1224, 0.0
    %1235 = vadd.xlane.f32.xlu0 %v1234
    %v1236 = vpop.xlane.xlu0 %1235
    %v1237 = vsel %vm235, %v1225, 0.0
    %1238 = vadd.xlane.f32.xlu0 %v1237
    %v1239 = vpop.xlane.xlu0 %1238
    %v1240 = vsel %vm235, %v1226, 0.0
    %1241 = vadd.xlane.f32.xlu0 %v1240
    %v1242 = vpop.xlane.xlu0 %1241
    %v1243 = vsel %vm235, %v1227, 0.0
    %1244 = vadd.xlane.f32.xlu0 %v1243
    %v1245 = vpop.xlane.xlu0 %1244
    %v1246 = vsel %vm235, %v1228, 0.0
    %1247 = vadd.xlane.f32.xlu0 %v1246
    %v1248 = vpop.xlane.xlu0 %1247
    %v1249 = vsel %vm235, %v1229, 0.0
    %1250 = vadd.xlane.f32.xlu0 %v1249
    %v1251 = vpop.xlane.xlu0 %1250
    %v1252 = vsel %vm235, %v1230, 0.0
    %1253 = vadd.xlane.f32.xlu0 %v1252
    %v1254 = vpop.xlane.xlu0 %1253
    %v1255 = vld [vmem:[#allocation3] sm:$0x1]
    %v1257 = vlaneseq
    %v1258 = vshrl.u32 %v1257, 7
    %v1259 = vsub.s32 0, %v1258
    %v1260 = vrot.slane %v1255, %v1259
    %1261 = vset.pattern.permute.xlu0 0
    %1262 = vperm.xlu0 %1261, %v1260
    %v1263 = vpop.permute.xlu0 %1262
    %v1265 = vadd.f32 %v1233, %v1263
    %v1266 = vadd.f32 %v1236, %v1263
    %v1267 = vadd.f32 %v1239, %v1263
    %v1268 = vadd.f32 %v1242, %v1263
    %v1269 = vadd.f32 %v1245, %v1263
    %v1270 = vadd.f32 %v1248, %v1263
    %v1271 = vadd.f32 %v1251, %v1263
    %v1272 = vadd.f32 %v1254, %v1263
    %v1273 = vsub.f32 %v1265, -1.8957443
    %v1274 = vsub.f32 %v1266, -1.8957443
    %v1275 = vsub.f32 %v1267, -1.8957443
    %v1276 = vsub.f32 %v1268, -1.8957443
    %v1277 = vsub.f32 %v1269, -1.8957443
    %v1278 = vsub.f32 %v1270, -1.8957443
    %v1279 = vsub.f32 %v1271, -1.8957443
    %v1280 = vsub.f32 %v1272, -1.8957443
    %v1281 = vrcp.pop 0.07030214
    %v1282 = vmul.f32 %v1273, %v1281
    %v1283 = vmul.f32 %v1274, %v1281
    %v1284 = vmul.f32 %v1275, %v1281
    %v1285 = vmul.f32 %v1276, %v1281
    %v1286 = vmul.f32 %v1277, %v1281
    %v1287 = vmul.f32 %v1278, %v1281
    %v1288 = vmul.f32 %v1279, %v1281
    %v1289 = vmul.f32 %v1280, %v1281
    %v1290 = vround.ne.pseudo %v1282
    %v1291 = vround.ne.pseudo %v1283
    %v1292 = vround.ne.pseudo %v1284
    %v1293 = vround.ne.pseudo %v1285
    %v1294 = vround.ne.pseudo %v1286
    %v1295 = vround.ne.pseudo %v1287
    %v1296 = vround.ne.pseudo %v1288
    %v1297 = vround.ne.pseudo %v1289
    %v1298 = vmul.f32 %v1290, 0.07030214
    %v1299 = vmul.f32 %v1291, 0.07030214
    %v1300 = vmul.f32 %v1292, 0.07030214
    %v1301 = vmul.f32 %v1293, 0.07030214
    %v1302 = vmul.f32 %v1294, 0.07030214
    %v1303 = vmul.f32 %v1295, 0.07030214
    %v1304 = vmul.f32 %v1296, 0.07030214
    %v1305 = vmul.f32 %v1297, 0.07030214
    %v1306 = vadd.f32 %v1298, -1.8957443
    %v1307 = vadd.f32 %v1299, -1.8957443
    %v1308 = vadd.f32 %v1300, -1.8957443
    %v1309 = vadd.f32 %v1301, -1.8957443
    %v1310 = vadd.f32 %v1302, -1.8957443
    %v1311 = vadd.f32 %v1303, -1.8957443
    %v1312 = vadd.f32 %v1304, -1.8957443
    %v1313 = vadd.f32 %v1305, -1.8957443
    %v1314 = vmax.f32 %v1306, -1.8957443
    %v1315 = vmax.f32 %v1307, -1.8957443
    %v1316 = vmax.f32 %v1308, -1.8957443
    %v1317 = vmax.f32 %v1309, -1.8957443
    %v1318 = vmax.f32 %v1310, -1.8957443
    %v1319 = vmax.f32 %v1311, -1.8957443
    %v1320 = vmax.f32 %v1312, -1.8957443
    %v1321 = vmax.f32 %v1313, -1.8957443
    %v1322 = vmin.f32 %v1314, 64.82099
    %v1323 = vmin.f32 %v1315, 64.82099
    %v1324 = vmin.f32 %v1316, 64.82099
    %v1325 = vmin.f32 %v1317, 64.82099
    %v1326 = vmin.f32 %v1318, 64.82099
    %v1327 = vmin.f32 %v1319, 64.82099
    %v1328 = vmin.f32 %v1320, 64.82099
    %v1329 = vmin.f32 %v1321, 64.82099
    %v1338 = vlaneseq
    %v1339 = vand.u32 %v1338, 127
    %v1340 = vlaneseq
    %v1341 = vshrl.u32 %v1340, 7
    %v1342 = vsub.s32 %v1339, %v1341
    %v1343 = vrot.slane %v1322, %v1342
    %v1344 = vlaneseq
    %v1345 = vshrl.u32 %v1344, 7
    %v1346 = vsub.s32 %v1339, %v1345
    %v1347 = vrot.slane %v1323, %v1346
    %v1348 = vlaneseq
    %v1349 = vshrl.u32 %v1348, 7
    %v1350 = vsub.s32 %v1339, %v1349
    %v1351 = vrot.slane %v1324, %v1350
    %v1352 = vlaneseq
    %v1353 = vshrl.u32 %v1352, 7
    %v1354 = vsub.s32 %v1339, %v1353
    %v1355 = vrot.slane %v1325, %v1354
    %v1356 = vlaneseq
    %v1357 = vshrl.u32 %v1356, 7
    %v1358 = vsub.s32 %v1339, %v1357
    %v1359 = vrot.slane %v1326, %v1358
    %v1360 = vlaneseq
    %v1361 = vshrl.u32 %v1360, 7
    %v1362 = vsub.s32 %v1339, %v1361
    %v1363 = vrot.slane %v1327, %v1362
    %v1364 = vlaneseq
    %v1365 = vshrl.u32 %v1364, 7
    %v1366 = vsub.s32 %v1339, %v1365
    %v1367 = vrot.slane %v1328, %v1366
    %v1368 = vlaneseq
    %v1369 = vshrl.u32 %v1368, 7
    %v1370 = vsub.s32 %v1339, %v1369
    %v1371 = vrot.slane %v1329, %v1370
    %vm1372 = vcmask 1041409
    %v1373 = vsel %vm1372, %v1347, %v1343
    %vm1374 = vcmask 1042434
    %v1375 = vsel %vm1374, %v1351, %v1373
    %vm1376 = vcmask 1043459
    %v1377 = vsel %vm1376, %v1355, %v1375
    %vm1378 = vcmask 1044484
    %v1379 = vsel %vm1378, %v1359, %v1377
    %vm1380 = vcmask 1045509
    %v1381 = vsel %vm1380, %v1363, %v1379
    %vm1382 = vcmask 1046534
    %v1383 = vsel %vm1382, %v1367, %v1381
    %vm1384 = vcmask 1047559
    %v1385 = vsel %vm1384, %v1371, %v1383
    %1387 = vst.msk [vmem:[#allocation12] sm:$0xff] %vm105, %v1385
    // Predicated region
    $region50: #{tpu_custom_call.1} parent=1 // pred_check
      _
    $region51: #{tpu_custom_call.1} parent=1 // pred_check_branch
      %1389 = sbr.rel (0) target = $region53
    $region52: #{tpu_custom_call.1} parent=1 // pred_region
      %s1391 = ssub.s32 128, 128
      %1392 = vsyncadd [#allocation6], %s1391
      %s1394 = sshll.u32 [#allocation12], 4
      %s1395 = int_to_ptr.vmem [resolvable:$true] %s1394
      %1397 = dma.vmem_to_hbm [thread:$0]  %s1395, 128, %s8, [#allocation6]
    $region53: #{tpu_custom_call.1} parent=1 // pred_fallthru
      _
    // Predicated region
    $region54: #{tpu_custom_call.1} parent=1 // pred_check
      _
    $region55: #{tpu_custom_call.1} parent=1 // pred_check_branch
      %1399 = sbr.rel (0) target = $region57
    $region56: #{tpu_custom_call.1} parent=1 // pred_region
      %1400 = dma.done [#allocation6], 128
    $region57: #{tpu_custom_call.1} parent=1 // pred_fallthru
      _
    %1401 = vsyncpa [#allocation5], 1
    %1402 = vsyncpa [#allocation8], 1
    %1403 = vsyncpa [#allocation11], 1
    %1404 = vsyncpa [#allocation6], 1

</llo_original>
